<compile_context>
chip_gen: v7x
topology: tpu7x:2x2x1
jax: 0.10.0
libtpu: 0.0.40
codegen_flags: <defaults>
</compile_context>

<pallas_src>
import jax
import jax.numpy as jnp
from jax.experimental import pallas as pl
from jax.experimental.pallas import tpu as pltpu


_VMEM_LIMIT_BYTES = 48 * 1024 * 1024   # raise scoped VMEM above 16/32 MiB defaults
_VMEM_BUDGET_BYTES = 40 * 1024 * 1024  # what the tile chooser targets (fits v7x)


def _round_up(x, m):
    return ((x + m - 1) // m) * m


def _choose_col_tile(n_flat, d, k_pad, budget_bytes=_VMEM_BUDGET_BYTES):
    """Largest column tile (multiple of 128) whose working set fits VMEM."""
    d_sub = _round_up(max(d, 1), 8)       # sublane padding of D
    d_lane = _round_up(max(d, 1), 128)    # lane padding of D
    # Resident codebook inputs (pipeline double-buffers them) + e2 lane pad.
    resident = 2 * (k_pad * d_lane + d_sub * k_pad + k_pad * 128) * 4
    tile = 128
    for cand in (2048, 1024, 512, 256, 128):
        inter = 4 * k_pad * cand * 4          # (K_pad, tm) f32 temporaries
        io = 2 * 2 * d_sub * cand * 4         # double-buffered x / q tiles
        idx_io = 2 * 8 * cand * 4             # double-buffered index tile
        if resident + inter + io + idx_io <= budget_bytes:
            tile = cand
            break
    # Never tile wider than the (128-padded) problem itself.
    return min(tile, max(128, _round_up(n_flat, 128)))


def _make_vq_kernel(n_valid, tm, k_pad):
    """Build the per-tile kernel (n_valid / tm / k_pad are static)."""

    def kernel(x_ref, e_ref, et_ref, e2_ref, q_ref, idx_ref, sse_ref):
        # x_ref  : (D, tm)      latents tile, voxels along lanes
        # e_ref  : (K_pad, D)   codebook (zero-padded rows)
        # et_ref : (D, K_pad)   codebook transposed (hoisted to wrapper)
        # e2_ref : (K_pad, 1)   ||e_k||^2, 1e30 on padded rows (hoisted)
        # q_ref  : (D, tm)      quantized tile (output)
        # idx_ref: (1, tm)      argmin indices, lane-dense (output)
        # sse_ref: (1, 1, 1)    per-tile sum of squared error (output)
        i = pl.program_id(0)

        x = x_ref[...].astype(jnp.float32)      # (D, tm)
        e = e_ref[...]                          # (K_pad, D)
        et = et_ref[...]                        # (D, K_pad)
        e2 = e2_ref[...]                        # (K_pad, 1)

        # cross[k, n] = e_k . x_n  — natural A @ B form for the MXU.
        cross = jax.lax.dot_general(
            e, x, (((1,), (0,)), ((), ())),
            preferred_element_type=jnp.float32)                  # (K_pad, tm)

        # ||x_n||^2 is a per-column constant -> dropped (argmin-invariant).
        dist = e2 - 2.0 * cross                                  # (K_pad, tm)

        # argmin over k (sublane axis) with first-occurrence tie-break,
        # matching torch.argmin.
        min_d = jnp.min(dist, axis=0, keepdims=True)             # (1, tm)
        iota_k = jax.lax.broadcasted_iota(jnp.int32, (k_pad, tm), 0)
        inds = jnp.min(jnp.where(dist == min_d, iota_k, k_pad),
                       axis=0, keepdims=True)                    # (1, tm)
        idx_ref[...] = inds.astype(jnp.int32)                    # lane-dense store

        # Gather codebook rows via one-hot matmul (same math as the module).
        one_hot = (iota_k == inds).astype(jnp.float32)           # (K_pad, tm)
        q = jax.lax.dot_general(
            et, one_hot, (((1,), (0,)), ((), ())),
            preferred_element_type=jnp.float32)                  # (D, tm)
        q_ref[...] = q.astype(q_ref.dtype)

        # Per-tile partial sum of squared error (masking padded voxels).
        diff = q - x
        sq = diff * diff
        if n_valid % tm != 0:
            col = i * tm + jax.lax.broadcasted_iota(jnp.int32, (1, tm), 1)
            sq = jnp.where(col < n_valid, sq, 0.0)
        sse_ref[...] = jnp.sum(sq).reshape(1, 1, 1)

    return kernel


def vector_quantizer(latents, embedding, beta=0.25, tm=None):
    """Forward pass of VectorQuantizer.

    latents   : (B, C, T, H, W) float32   (NCDHW, as in PyTorch)
    embedding : (K, D) float32 codebook, with D == C
    returns   : (quantized NCDHW, vq_loss scalar, encoding_inds (B, T, H, W) int32)
    """
    B, C, T, H, W = latents.shape
    K, D = embedding.shape
    assert C == D, "embedding_dim must equal channel dim"

    n_flat = B * T * H * W
    k_pad = _round_up(max(K, 1), 128)

    if tm is None:
        tm = _choose_col_tile(n_flat, D, k_pad)
    assert tm % 128 == 0, "column tile must be a multiple of 128"
    n_tiles = pl.cdiv(n_flat, tm)
    n_flat_pad = n_tiles * tm

    # Channel-leading flatten: (B, C, T, H, W) -> (C, B*T*H*W); pad voxels.
    x_t = jnp.transpose(latents, (1, 0, 2, 3, 4)).reshape(D, n_flat)
    if n_flat_pad != n_flat:
        x_t = jnp.pad(x_t, ((0, 0), (0, n_flat_pad - n_flat)))

    # Codebook prep (done once in the wrapper, not per grid step).
    e = embedding.astype(jnp.float32)
    e2 = jnp.sum(e * e, axis=1, keepdims=True)                 # (K, 1)
    if k_pad != K:
        e = jnp.pad(e, ((0, k_pad - K), (0, 0)))
        e2 = jnp.pad(e2, ((0, k_pad - K), (0, 0)), constant_values=1e30)
    e_t = e.T                                                  # (D, K_pad)

    # TODO(synk): for very large K, chunk the codebook inside the kernel
    # (running min/argmin carry) instead of materializing full (K_pad, tm).
    kernel = _make_vq_kernel(n_flat, tm, k_pad)

    q_t, idx, sse_parts = pl.pallas_call(
        kernel,
        out_shape=(
            jax.ShapeDtypeStruct((D, n_flat_pad), latents.dtype),
            jax.ShapeDtypeStruct((1, n_flat_pad), jnp.int32),
            jax.ShapeDtypeStruct((n_tiles, 1, 1), jnp.float32),
        ),
        grid_spec=pltpu.PrefetchScalarGridSpec(
            num_scalar_prefetch=0,
            grid=(n_tiles,),
            in_specs=[
                pl.BlockSpec((D, tm), lambda i: (0, i)),         # latents tile
                pl.BlockSpec((k_pad, D), lambda i: (0, 0)),      # codebook
                pl.BlockSpec((D, k_pad), lambda i: (0, 0)),      # codebook^T
                pl.BlockSpec((k_pad, 1), lambda i: (0, 0)),      # ||e||^2
            ],
            out_specs=[
                pl.BlockSpec((D, tm), lambda i: (0, i)),         # quantized tile
                pl.BlockSpec((1, tm), lambda i: (0, i)),         # indices (lane-dense)
                pl.BlockSpec((1, 1, 1), lambda i: (i, 0, 0)),    # per-tile SSE
            ],
        ),
        compiler_params=pltpu.CompilerParams(
            dimension_semantics=("parallel",),
            vmem_limit_bytes=_VMEM_LIMIT_BYTES,
        ),
    )(x_t, e, e_t, e2)

    sse = jnp.sum(sse_parts)
    mse = sse / jnp.float32(n_flat * D)
    # commitment_loss and embedding_loss have identical forward values (MSE);
    # gradients differ only under autodiff via detach/stop_gradient.
    vq_loss = mse * beta + mse

    q_t = q_t[:, :n_flat]                                       # (D, N_flat)
    # straight-through estimator: forward value == quantized
    quantized = jnp.transpose(q_t.reshape(C, B, T, H, W), (1, 0, 2, 3, 4))
    enc_inds = idx[0, :n_flat].reshape(B, T, H, W)              # int32 (torch: int64)
    return quantized, vq_loss, enc_inds


if __name__ == "__main__":
    # Small, deterministic example consistent with a 3-D VQ-VAE latent.
    B, C, T, H, W = 2, 4, 4, 8, 8     # embedding_dim D = C = 4
    K = 8                             # num_embeddings
    beta = 0.25

    key = jax.random.PRNGKey(0)
    k_lat, k_emb = jax.random.split(key)
    latents = jax.random.normal(k_lat, (B, C, T, H, W), dtype=jnp.float32)
    # nn.Embedding(K, D).weight.data.uniform_(-1/K, 1/K)
    embedding = jax.random.uniform(k_emb, (K, C), dtype=jnp.float32,
                                   minval=-1.0 / K, maxval=1.0 / K)

    quantized, vq_loss, enc_inds = jax.block_until_ready(
        vector_quantizer(latents, embedding, beta=beta))

    # Pure-JAX reference check.
    lat_nhwc = jnp.transpose(latents, (0, 2, 3, 4, 1)).reshape(-1, C)
    d = (jnp.sum(lat_nhwc ** 2, axis=1, keepdims=True)
         + jnp.sum(embedding ** 2, axis=1)
         - 2.0 * lat_nhwc @ embedding.T)
    ref_idx = jnp.argmin(d, axis=1)
    ref_q_flat = embedding[ref_idx]
    ref_mse = jnp.mean((ref_q_flat - lat_nhwc) ** 2)
    ref_loss = ref_mse * beta + ref_mse
    ref_q = jnp.transpose(ref_q_flat.reshape(B, T, H, W, C), (0, 4, 1, 2, 3))
    ref_inds = ref_idx.reshape(B, T, H, W)

    assert quantized.shape == (B, C, T, H, W)
    assert enc_inds.shape == (B, T, H, W)
    assert jnp.allclose(quantized, ref_q, atol=1e-5)
    assert jnp.allclose(vq_loss, ref_loss, atol=1e-5)
    assert jnp.all(enc_inds == ref_inds.astype(jnp.int32))

    print("KERNEL_OK")
</pallas_src>

<mosaic_0001>
module attributes {stable_mosaic.version = 11 : i64} {
  func.func @kernel(%arg0: i32, %arg1: memref<4x512xf32, #tpu.memory_space<vmem>>, %arg2: memref<128x4xf32, #tpu.memory_space<vmem>>, %arg3: memref<4x128xf32, #tpu.memory_space<vmem>>, %arg4: memref<128x1xf32, #tpu.memory_space<vmem>>, %arg5: memref<4x512xf32, #tpu.memory_space<vmem>>, %arg6: memref<1x512xi32, #tpu.memory_space<vmem>>, %arg7: memref<1x1x1xf32, #tpu.memory_space<vmem>>) attributes {dimension_semantics = [#tpu.dimension_semantics<parallel>], iteration_bounds = array<i64: 1>, scalar_prefetch = 0 : i64, scratch_operands = 0 : i64, tpu.core_type = #tpu.core_type<tc>, window_params = [{transform_indices = @transform_0, window_bounds = array<i64: 4, 512>}, {pipeline_mode = #tpu.pipeline_mode<synchronous>, transform_indices = @transform_1, window_bounds = array<i64: 128, 4>}, {pipeline_mode = #tpu.pipeline_mode<synchronous>, transform_indices = @transform_2, window_bounds = array<i64: 4, 128>}, {pipeline_mode = #tpu.pipeline_mode<synchronous>, transform_indices = @transform_3, window_bounds = array<i64: 128, 1>}, {transform_indices = @transform_4, window_bounds = array<i64: 4, 512>}, {transform_indices = @transform_5, window_bounds = array<i64: 1, 512>}, {transform_indices = @transform_6, window_bounds = array<i64: 1, 1, 1>}]} {
    %c0 = arith.constant 0 : index
    %c0_0 = arith.constant 0 : index
    %0 = vector.load %arg1[%c0, %c0_0] : memref<4x512xf32, #tpu.memory_space<vmem>>, vector<4x512xf32>
    %c0_1 = arith.constant 0 : index
    %c0_2 = arith.constant 0 : index
    %1 = vector.load %arg2[%c0_1, %c0_2] : memref<128x4xf32, #tpu.memory_space<vmem>>, vector<128x4xf32>
    %c0_3 = arith.constant 0 : index
    %c0_4 = arith.constant 0 : index
    %2 = vector.load %arg3[%c0_3, %c0_4] : memref<4x128xf32, #tpu.memory_space<vmem>>, vector<4x128xf32>
    %c0_5 = arith.constant 0 : index
    %c0_6 = arith.constant 0 : index
    %3 = vector.load %arg4[%c0_5, %c0_6] : memref<128x1xf32, #tpu.memory_space<vmem>>, vector<128x1xf32>
    %cst = arith.constant dense<0.000000e+00> : vector<128x512xf32>
    %4 = tpu.matmul %1, %0, %cst {dimension_numbers = #tpu.dot_dimension_numbers<[1], [0], [0], [1], [0, 0, 1, 1], [], []>} : vector<128x4xf32>, vector<4x512xf32>, vector<128x512xf32> -> vector<128x512xf32>
    %cst_7 = arith.constant 2.000000e+00 : f32
    %5 = vector.broadcast %cst_7 : f32 to vector<128x512xf32>
    %6 = arith.mulf %5, %4 : vector<128x512xf32>
    %7 = vector.broadcast %3 : vector<128x1xf32> to vector<128x512xf32>
    %8 = arith.subf %7, %6 : vector<128x512xf32>
    %cst_8 = arith.constant dense<0x7F800000> : vector<512xf32>
    %9 = vector.multi_reduction <minimumf>, %8, %cst_8 [0] : vector<128x512xf32> to vector<512xf32>
    %10 = vector.shape_cast %9 : vector<512xf32> to vector<1x512xf32>
    %11 = tpu.iota {dimensions = array<i32: 0>} : vector<128x512xi32>
    %12 = vector.broadcast %10 : vector<1x512xf32> to vector<128x512xf32>
    %13 = arith.cmpf oeq, %8, %12 : vector<128x512xf32>
    %c128_i32 = arith.constant 128 : i32
    %14 = vector.broadcast %c128_i32 : i32 to vector<128x512xi32>
    %15 = arith.select %13, %11, %14 : vector<128x512xi1>, vector<128x512xi32>
    %cst_9 = arith.constant dense<2147483647> : vector<512xi32>
    %16 = vector.multi_reduction <minsi>, %15, %cst_9 [0] : vector<128x512xi32> to vector<512xi32>
    %17 = vector.shape_cast %16 : vector<512xi32> to vector<1x512xi32>
    %c0_10 = arith.constant 0 : index
    %c0_11 = arith.constant 0 : index
    %18 = vector.load %arg6[%c0_10, %c0_11] : memref<1x512xi32, #tpu.memory_space<vmem>>, vector<1x512xi32>
    tpu.vector_store %arg6[%c0_10, %c0_11], %17 {strides = array<i32>} : memref<1x512xi32, #tpu.memory_space<vmem>>, vector<1x512xi32>,
    %19 = vector.broadcast %17 : vector<1x512xi32> to vector<128x512xi32>
    %20 = arith.cmpi eq, %11, %19 : vector<128x512xi32>
    %21 = arith.extui %20 : vector<128x512xi1> to vector<128x512xi32>
    %22 = arith.sitofp %21 : vector<128x512xi32> to vector<128x512xf32>
    %cst_12 = arith.constant dense<0.000000e+00> : vector<4x512xf32>
    %23 = tpu.matmul %2, %22, %cst_12 {dimension_numbers = #tpu.dot_dimension_numbers<[1], [0], [0], [1], [0, 0, 1, 1], [], []>} : vector<4x128xf32>, vector<128x512xf32>, vector<4x512xf32> -> vector<4x512xf32>
    %c0_13 = arith.constant 0 : index
    %c0_14 = arith.constant 0 : index
    %24 = vector.load %arg5[%c0_13, %c0_14] : memref<4x512xf32, #tpu.memory_space<vmem>>, vector<4x512xf32>
    tpu.vector_store %arg5[%c0_13, %c0_14], %23 {strides = array<i32>} : memref<4x512xf32, #tpu.memory_space<vmem>>, vector<4x512xf32>,
    %25 = arith.subf %23, %0 : vector<4x512xf32>
    %26 = arith.mulf %25, %25 : vector<4x512xf32>
    %27 = vector.shape_cast %26 : vector<4x512xf32> to vector<1x4x512xf32>
    %cst_15 = arith.constant dense<0.000000e+00> : vector<1xf32>
    %28 = vector.multi_reduction <add>, %27, %cst_15 [1, 2] : vector<1x4x512xf32> to vector<1xf32>
    %29 = vector.shape_cast %28 : vector<1xf32> to vector<1x1x1xf32>
    %30 = vector.extract %29[0, 0, 0] : f32 from vector<1x1x1xf32>
    %31 = vector.broadcast %30 : f32 to vector<1x1x1xf32>
    %c0_16 = arith.constant 0 : index
    %c0_17 = arith.constant 0 : index
    %c0_18 = arith.constant 0 : index
    %32 = vector.load %arg7[%c0_16, %c0_17, %c0_18] : memref<1x1x1xf32, #tpu.memory_space<vmem>>, vector<1x1x1xf32>
    tpu.vector_store %arg7[%c0_16, %c0_17, %c0_18], %31 {strides = array<i32>} : memref<1x1x1xf32, #tpu.memory_space<vmem>>, vector<1x1x1xf32>,
    return
  }
  func.func @transform_0(%arg0: i32) -> (i32, i32) {
    %c0_i32 = arith.constant 0 : i32
    %c0_i32_0 = arith.constant 0 : i32
    return %c0_i32, %arg0 : i32, i32
  }
  func.func @transform_1(%arg0: i32) -> (i32, i32) {
    %c0_i32 = arith.constant 0 : i32
    %c0_i32_0 = arith.constant 0 : i32
    %c0_i32_1 = arith.constant 0 : i32
    return %c0_i32, %c0_i32_0 : i32, i32
  }
  func.func @transform_2(%arg0: i32) -> (i32, i32) {
    %c0_i32 = arith.constant 0 : i32
    %c0_i32_0 = arith.constant 0 : i32
    %c0_i32_1 = arith.constant 0 : i32
    return %c0_i32, %c0_i32_0 : i32, i32
  }
  func.func @transform_3(%arg0: i32) -> (i32, i32) {
    %c0_i32 = arith.constant 0 : i32
    %c0_i32_0 = arith.constant 0 : i32
    %c0_i32_1 = arith.constant 0 : i32
    return %c0_i32, %c0_i32_0 : i32, i32
  }
  func.func @transform_4(%arg0: i32) -> (i32, i32) {
    %c0_i32 = arith.constant 0 : i32
    %c0_i32_0 = arith.constant 0 : i32
    return %c0_i32, %arg0 : i32, i32
  }
  func.func @transform_5(%arg0: i32) -> (i32, i32) {
    %c0_i32 = arith.constant 0 : i32
    %c0_i32_0 = arith.constant 0 : i32
    return %c0_i32, %arg0 : i32, i32
  }
  func.func @transform_6(%arg0: i32) -> (i32, i32, i32) {
    %c0_i32 = arith.constant 0 : i32
    %c0_i32_0 = arith.constant 0 : i32
    %c0_i32_1 = arith.constant 0 : i32
    return %arg0, %c0_i32, %c0_i32_0 : i32, i32, i32
  }
}

</mosaic_0001>

<llo_original>
// kernel: tpu_custom_call.1
$region0: #{tpu_custom_call.1}
  #allocation0 [shape = 'u32[]', space=smem, size = 0x4, offset = 0x4, fixed_abs, tag = 'smem constant byte address 0x4 - core index']
  #allocation1 [shape = 'u32[144,128]{1,0:T(1,128)}', space=vmem, size = 0x12000, scoped, tag = 'internal scratch']
  %s0 = inlined_call_operand.vmem [shape: f32[4,512], index: 0, kind: input, shape index: {}]
  %s1 = inlined_call_operand.vmem [shape: f32[128,4], index: 1, kind: input, shape index: {}]
  %s2 = inlined_call_operand.vmem [shape: f32[4,128], index: 2, kind: input, shape index: {}]
  %s3 = inlined_call_operand.vmem [shape: f32[128,1], index: 3, kind: input, shape index: {}]
  %s4 = inlined_call_operand.hbm [shape: f32[4,512], index: 4, kind: output, shape index: {0}]
  %s5 = inlined_call_operand.hbm [shape: s32[1,512], index: 5, kind: output, shape index: {1}]
  %s6 = inlined_call_operand.hbm [shape: f32[1,1,1], index: 6, kind: output, shape index: {2}]
  %7 = xla_tuple %s4, %s5, %s6
  %s8 = sld [smem:[#allocation0]]
  $region42: #{tpu_custom_call.1} parent=0
    _
  %s10 = ssub.s32 1, %s8
  %s11 = scalar_select 0, %s10, %s8
  $region1: #{tpu_custom_call.1} parent=0
    #allocation2 [shape = 'u8[8192]{0}', space=vmem, size = 0x2000, scoped, tag = 'output window, operand 0, single buffered']
    #allocation3 [shape = 's32[1]{0}', space=sflag, size = 0x4, scoped, tag = 'scoped memory for tpu_custom_call.1']
    #allocation4 [shape = 'u8[2048]{0}', space=vmem, size = 0x800, scoped, tag = 'output window, operand 1, single buffered']
    #allocation5 [shape = 's32[1]{0}', space=sflag, size = 0x4, scoped, tag = 'scoped memory for tpu_custom_call.1']
    #allocation6 [shape = 'u8[512]{0}', space=vmem, size = 0x400, scoped, tag = 'output window, operand 2, single buffered']
    %12 = vsyncpa [#allocation3], 0
    %13 = vsyncpa [#allocation5], 0
    // Predicated region
    $region2: #{tpu_custom_call.1} parent=1 // pred_check
      _
    $region3: #{tpu_custom_call.1} parent=1 // pred_check_branch
      %15 = sbr.rel (0) target = $region5
    $region4: #{tpu_custom_call.1} parent=1 // pred_region
      _
    $region5: #{tpu_custom_call.1} parent=1 // pred_fallthru
      _
    // Predicated region
    $region6: #{tpu_custom_call.1} parent=1 // pred_check
      _
    $region7: #{tpu_custom_call.1} parent=1 // pred_check_branch
      %17 = sbr.rel (0) target = $region9
    $region8: #{tpu_custom_call.1} parent=1 // pred_region
      _
    $region9: #{tpu_custom_call.1} parent=1 // pred_fallthru
      _
    // Predicated region
    $region10: #{tpu_custom_call.1} parent=1 // pred_check
      _
    $region11: #{tpu_custom_call.1} parent=1 // pred_check_branch
      %19 = sbr.rel (0) target = $region13
    $region12: #{tpu_custom_call.1} parent=1 // pred_region
      _
    $region13: #{tpu_custom_call.1} parent=1 // pred_fallthru
      _
    // Predicated region
    $region14: #{tpu_custom_call.1} parent=1 // pred_check
      _
    $region15: #{tpu_custom_call.1} parent=1 // pred_check_branch
      %21 = sbr.rel (0) target = $region17
    $region16: #{tpu_custom_call.1} parent=1 // pred_region
      _
    $region17: #{tpu_custom_call.1} parent=1 // pred_fallthru
      _
    %v22 = vld [vmem:[%s0] sm:$0xff]
    %v23 = vld [vmem:[%s0 + $0x8] sm:$0xff]
    %v24 = vld [vmem:[%s1] sm:$0xff]
    %v25 = vld [vmem:[%s1 + $0x8] sm:$0xff]
    %v26 = vld [vmem:[%s1 + $0x10] sm:$0xff]
    %v27 = vld [vmem:[%s1 + $0x18] sm:$0xff]
    %v28 = vld [vmem:[%s1 + $0x20] sm:$0xff]
    %v29 = vld [vmem:[%s1 + $0x28] sm:$0xff]
    %v30 = vld [vmem:[%s1 + $0x30] sm:$0xff]
    %v31 = vld [vmem:[%s1 + $0x38] sm:$0xff]
    %v32 = vld [vmem:[%s1 + $0x40] sm:$0xff]
    %v33 = vld [vmem:[%s1 + $0x48] sm:$0xff]
    %v34 = vld [vmem:[%s1 + $0x50] sm:$0xff]
    %v35 = vld [vmem:[%s1 + $0x58] sm:$0xff]
    %v36 = vld [vmem:[%s1 + $0x60] sm:$0xff]
    %v37 = vld [vmem:[%s1 + $0x68] sm:$0xff]
    %v38 = vld [vmem:[%s1 + $0x70] sm:$0xff]
    %v39 = vld [vmem:[%s1 + $0x78] sm:$0xff]
    %v40 = vld [vmem:[%s2] sm:$0xf]
    %v41 = vld [vmem:[%s3] sm:$0xff]
    %v42 = vld [vmem:[%s3 + $0x8] sm:$0xff]
    %v43 = vld [vmem:[%s3 + $0x10] sm:$0xff]
    %v44 = vld [vmem:[%s3 + $0x18] sm:$0xff]
    %v45 = vld [vmem:[%s3 + $0x20] sm:$0xff]
    %v46 = vld [vmem:[%s3 + $0x28] sm:$0xff]
    %v47 = vld [vmem:[%s3 + $0x30] sm:$0xff]
    %v48 = vld [vmem:[%s3 + $0x38] sm:$0xff]
    %v49 = vld [vmem:[%s3 + $0x40] sm:$0xff]
    %v50 = vld [vmem:[%s3 + $0x48] sm:$0xff]
    %v51 = vld [vmem:[%s3 + $0x50] sm:$0xff]
    %v52 = vld [vmem:[%s3 + $0x58] sm:$0xff]
    %v53 = vld [vmem:[%s3 + $0x60] sm:$0xff]
    %v54 = vld [vmem:[%s3 + $0x68] sm:$0xff]
    %v55 = vld [vmem:[%s3 + $0x70] sm:$0xff]
    %v56 = vld [vmem:[%s3 + $0x78] sm:$0xff]
    %v59 = vcombine.high %v22, %v22
    %v60 = vcombine.high %v23, %v23
    %vm61 = vcmask 31744
    %v63 = vsel %vm61, %v24, 0
    %v66 = vsel %vm61, %v25, 0
    %v69 = vsel %vm61, %v26, 0
    %v72 = vsel %vm61, %v27, 0
    %v75 = vsel %vm61, %v28, 0
    %v78 = vsel %vm61, %v29, 0
    %v81 = vsel %vm61, %v30, 0
    %v84 = vsel %vm61, %v31, 0
    %v87 = vsel %vm61, %v32, 0
    %v90 = vsel %vm61, %v33, 0
    %v93 = vsel %vm61, %v34, 0
    %v96 = vsel %vm61, %v35, 0
    %v99 = vsel %vm61, %v36, 0
    %v102 = vsel %vm61, %v37, 0
    %v105 = vsel %vm61, %v38, 0
    %v108 = vsel %vm61, %v39, 0
    %vm110 = vcmask 1043456
    %v111 = vsel %vm110, %v22, 0
    %v113 = vsel %vm110, %v59, 0
    %v115 = vsel %vm110, %v23, 0
    %v117 = vsel %vm110, %v60, 0
    %119 = vmatprep.subr.mxu0 %v113
    %120 = vmatpush1.msra.mxu0 %v111
    %121 = vmatprep.subr.mxu0 0.0
    %122 = vmatpush1.msra.mxu0 0.0
    %123 = vmatprep.subr.mxu0 0.0
    %124 = vmatpush1.msra.mxu0 0.0
    %125 = vmatprep.subr.mxu0 0.0
    %126 = vmatpush1.msra.mxu0 0.0
    %127 = vmatprep.subr.mxu0 0.0
    %128 = vmatpush1.msra.mxu0 0.0
    %129 = vmatprep.subr.mxu0 0.0
    %130 = vmatpush1.msra.mxu0 0.0
    %131 = vmatprep.subr.mxu0 0.0
    %132 = vmatpush1.msra.mxu0 0.0
    %133 = vmatprep.subr.mxu0 0.0
    %134 = vmatpush1.msra.mxu0 0.0
    %135 = vmatprep.subr.mxu0 0.0
    %136 = vmatpush1.msra.mxu0 0.0
    %137 = vmatprep.subr.mxu0 0.0
    %138 = vmatpush1.msra.mxu0 0.0
    %139 = vmatprep.subr.mxu0 0.0
    %140 = vmatpush1.msra.mxu0 0.0
    %141 = vmatprep.subr.mxu0 0.0
    %142 = vmatpush1.msra.mxu0 0.0
    %143 = vmatprep.subr.mxu0 0.0
    %144 = vmatpush1.msra.mxu0 0.0
    %145 = vmatprep.subr.mxu0 0.0
    %146 = vmatpush1.msra.mxu0 0.0
    %147 = vmatprep.subr.mxu0 0.0
    %148 = vmatpush1.msra.mxu0 0.0
    %149 = vmatprep.subr.mxu0 0.0
    %150 = vmatpush1.msra.mxu0 0.0
    %151 = vmatprep.subr.mxu0 0.0
    %152 = vmatpush1.msra.mxu0 0.0
    %153 = vmatprep.subr.mxu0 0.0
    %154 = vmatpush1.msra.mxu0 0.0
    %155 = vmatprep.subr.mxu0 0.0
    %156 = vmatpush1.msra.mxu0 0.0
    %157 = vmatprep.subr.mxu0 0.0
    %158 = vmatpush1.msra.mxu0 0.0
    %159 = vmatprep.subr.mxu0 0.0
    %160 = vmatpush1.msra.mxu0 0.0
    %161 = vmatprep.subr.mxu0 0.0
    %162 = vmatpush1.msra.mxu0 0.0
    %163 = vmatprep.subr.mxu0 0.0
    %164 = vmatpush1.msra.mxu0 0.0
    %165 = vmatprep.subr.mxu0 0.0
    %166 = vmatpush1.msra.mxu0 0.0
    %167 = vmatprep.subr.mxu0 0.0
    %168 = vmatpush1.msra.mxu0 0.0
    %169 = vmatprep.subr.mxu0 0.0
    %170 = vmatpush1.msra.mxu0 0.0
    %171 = vmatprep.subr.mxu0 0.0
    %172 = vmatpush1.msra.mxu0 0.0
    %173 = vmatprep.subr.mxu0 0.0
    %174 = vmatpush1.msra.mxu0 0.0
    %175 = vmatprep.subr.mxu0 0.0
    %176 = vmatpush1.msra.mxu0 0.0
    %177 = vmatprep.subr.mxu0 0.0
    %178 = vmatpush1.msra.mxu0 0.0
    %179 = vmatprep.subr.mxu0 0.0
    %180 = vmatpush1.msra.mxu0 0.0
    %181 = vmatprep.subr.mxu0 0.0
    %182 = vmatpush1.msra.mxu0 0.0
    %183 = vmatprep.mubr.f32.mxu0 0.0
    %184 = vmatmul.mubr.f32.gmra.mrb[0].mxu0 %v63
    %v185 = vpop.f32.mrb[0].mxu0
    %v186 = vadd.f32 0.0, %v185
    %v187 = vpop.f32.mrb[0].mxu0
    %v188 = vadd.f32 0.0, %v187
    %189 = vmatprep.mubr.f32.mxu0 0.0
    %190 = vmatmul.mubr.f32.gmra.mrb[0].mxu0 %v66
    %v191 = vpop.f32.mrb[0].mxu0
    %v192 = vadd.f32 0.0, %v191
    %v193 = vpop.f32.mrb[0].mxu0
    %v194 = vadd.f32 0.0, %v193
    %195 = vmatprep.mubr.f32.mxu0 0.0
    %196 = vmatmul.mubr.f32.gmra.mrb[0].mxu0 %v69
    %v197 = vpop.f32.mrb[0].mxu0
    %v198 = vadd.f32 0.0, %v197
    %v199 = vpop.f32.mrb[0].mxu0
    %v200 = vadd.f32 0.0, %v199
    %201 = vmatprep.mubr.f32.mxu0 0.0
    %202 = vmatmul.mubr.f32.gmra.mrb[0].mxu0 %v72
    %v203 = vpop.f32.mrb[0].mxu0
    %v204 = vadd.f32 0.0, %v203
    %v205 = vpop.f32.mrb[0].mxu0
    %v206 = vadd.f32 0.0, %v205
    %207 = vmatprep.mubr.f32.mxu0 0.0
    %208 = vmatmul.mubr.f32.gmra.mrb[0].mxu0 %v75
    %v209 = vpop.f32.mrb[0].mxu0
    %v210 = vadd.f32 0.0, %v209
    %v211 = vpop.f32.mrb[0].mxu0
    %v212 = vadd.f32 0.0, %v211
    %213 = vmatprep.mubr.f32.mxu0 0.0
    %214 = vmatmul.mubr.f32.gmra.mrb[0].mxu0 %v78
    %v215 = vpop.f32.mrb[0].mxu0
    %v216 = vadd.f32 0.0, %v215
    %v217 = vpop.f32.mrb[0].mxu0
    %v218 = vadd.f32 0.0, %v217
    %219 = vmatprep.mubr.f32.mxu0 0.0
    %220 = vmatmul.mubr.f32.gmra.mrb[0].mxu0 %v81
    %v221 = vpop.f32.mrb[0].mxu0
    %v222 = vadd.f32 0.0, %v221
    %v223 = vpop.f32.mrb[0].mxu0
    %v224 = vadd.f32 0.0, %v223
    %225 = vmatprep.mubr.f32.mxu0 0.0
    %226 = vmatmul.mubr.f32.gmra.mrb[0].mxu0 %v84
    %v227 = vpop.f32.mrb[0].mxu0
    %v228 = vadd.f32 0.0, %v227
    %v229 = vpop.f32.mrb[0].mxu0
    %v230 = vadd.f32 0.0, %v229
    %231 = vmatprep.mubr.f32.mxu0 0.0
    %232 = vmatmul.mubr.f32.gmra.mrb[0].mxu0 %v87
    %v233 = vpop.f32.mrb[0].mxu0
    %v234 = vadd.f32 0.0, %v233
    %v235 = vpop.f32.mrb[0].mxu0
    %v236 = vadd.f32 0.0, %v235
    %237 = vmatprep.mubr.f32.mxu0 0.0
    %238 = vmatmul.mubr.f32.gmra.mrb[0].mxu0 %v90
    %v239 = vpop.f32.mrb[0].mxu0
    %v240 = vadd.f32 0.0, %v239
    %v241 = vpop.f32.mrb[0].mxu0
    %v242 = vadd.f32 0.0, %v241
    %243 = vmatprep.mubr.f32.mxu0 0.0
    %244 = vmatmul.mubr.f32.gmra.mrb[0].mxu0 %v93
    %v245 = vpop.f32.mrb[0].mxu0
    %v246 = vadd.f32 0.0, %v245
    %v247 = vpop.f32.mrb[0].mxu0
    %v248 = vadd.f32 0.0, %v247
    %249 = vmatprep.mubr.f32.mxu0 0.0
    %250 = vmatmul.mubr.f32.gmra.mrb[0].mxu0 %v96
    %v251 = vpop.f32.mrb[0].mxu0
    %v252 = vadd.f32 0.0, %v251
    %v253 = vpop.f32.mrb[0].mxu0
    %v254 = vadd.f32 0.0, %v253
    %255 = vmatprep.mubr.f32.mxu0 0.0
    %256 = vmatmul.mubr.f32.gmra.mrb[0].mxu0 %v99
    %v257 = vpop.f32.mrb[0].mxu0
    %v258 = vadd.f32 0.0, %v257
    %v259 = vpop.f32.mrb[0].mxu0
    %v260 = vadd.f32 0.0, %v259
    %261 = vmatprep.mubr.f32.mxu0 0.0
    %262 = vmatmul.mubr.f32.gmra.mrb[0].mxu0 %v102
    %v263 = vpop.f32.mrb[0].mxu0
    %v264 = vadd.f32 0.0, %v263
    %v265 = vpop.f32.mrb[0].mxu0
    %v266 = vadd.f32 0.0, %v265
    %267 = vmatprep.mubr.f32.mxu0 0.0
    %268 = vmatmul.mubr.f32.gmra.mrb[0].mxu0 %v105
    %v269 = vpop.f32.mrb[0].mxu0
    %v270 = vadd.f32 0.0, %v269
    %v271 = vpop.f32.mrb[0].mxu0
    %v272 = vadd.f32 0.0, %v271
    %273 = vmatprep.mubr.f32.mxu0 0.0
    %274 = vmatmul.mubr.f32.gmra.mrb[0].mxu0 %v108
    %v275 = vpop.f32.mrb[0].mxu0
    %v276 = vadd.f32 0.0, %v275
    %v277 = vpop.f32.mrb[0].mxu0
    %v278 = vadd.f32 0.0, %v277
    %279 = vdwg.mxu0
    %280 = vmatprep.subr.mxu0 %v117
    %281 = vmatpush1.msra.mxu0 %v115
    %282 = vmatprep.subr.mxu0 0.0
    %283 = vmatpush1.msra.mxu0 0.0
    %284 = vmatprep.subr.mxu0 0.0
    %285 = vmatpush1.msra.mxu0 0.0
    %286 = vmatprep.subr.mxu0 0.0
    %287 = vmatpush1.msra.mxu0 0.0
    %288 = vmatprep.subr.mxu0 0.0
    %289 = vmatpush1.msra.mxu0 0.0
    %290 = vmatprep.subr.mxu0 0.0
    %291 = vmatpush1.msra.mxu0 0.0
    %292 = vmatprep.subr.mxu0 0.0
    %293 = vmatpush1.msra.mxu0 0.0
    %294 = vmatprep.subr.mxu0 0.0
    %295 = vmatpush1.msra.mxu0 0.0
    %296 = vmatprep.subr.mxu0 0.0
    %297 = vmatpush1.msra.mxu0 0.0
    %298 = vmatprep.subr.mxu0 0.0
    %299 = vmatpush1.msra.mxu0 0.0
    %300 = vmatprep.subr.mxu0 0.0
    %301 = vmatpush1.msra.mxu0 0.0
    %302 = vmatprep.subr.mxu0 0.0
    %303 = vmatpush1.msra.mxu0 0.0
    %304 = vmatprep.subr.mxu0 0.0
    %305 = vmatpush1.msra.mxu0 0.0
    %306 = vmatprep.subr.mxu0 0.0
    %307 = vmatpush1.msra.mxu0 0.0
    %308 = vmatprep.subr.mxu0 0.0
    %309 = vmatpush1.msra.mxu0 0.0
    %310 = vmatprep.subr.mxu0 0.0
    %311 = vmatpush1.msra.mxu0 0.0
    %312 = vmatprep.subr.mxu0 0.0
    %313 = vmatpush1.msra.mxu0 0.0
    %314 = vmatprep.subr.mxu0 0.0
    %315 = vmatpush1.msra.mxu0 0.0
    %316 = vmatprep.subr.mxu0 0.0
    %317 = vmatpush1.msra.mxu0 0.0
    %318 = vmatprep.subr.mxu0 0.0
    %319 = vmatpush1.msra.mxu0 0.0
    %320 = vmatprep.subr.mxu0 0.0
    %321 = vmatpush1.msra.mxu0 0.0
    %322 = vmatprep.subr.mxu0 0.0
    %323 = vmatpush1.msra.mxu0 0.0
    %324 = vmatprep.subr.mxu0 0.0
    %325 = vmatpush1.msra.mxu0 0.0
    %326 = vmatprep.subr.mxu0 0.0
    %327 = vmatpush1.msra.mxu0 0.0
    %328 = vmatprep.subr.mxu0 0.0
    %329 = vmatpush1.msra.mxu0 0.0
    %330 = vmatprep.subr.mxu0 0.0
    %331 = vmatpush1.msra.mxu0 0.0
    %332 = vmatprep.subr.mxu0 0.0
    %333 = vmatpush1.msra.mxu0 0.0
    %334 = vmatprep.subr.mxu0 0.0
    %335 = vmatpush1.msra.mxu0 0.0
    %336 = vmatprep.subr.mxu0 0.0
    %337 = vmatpush1.msra.mxu0 0.0
    %338 = vmatprep.subr.mxu0 0.0
    %339 = vmatpush1.msra.mxu0 0.0
    %340 = vmatprep.subr.mxu0 0.0
    %341 = vmatpush1.msra.mxu0 0.0
    %342 = vmatprep.subr.mxu0 0.0
    %343 = vmatpush1.msra.mxu0 0.0
    %344 = vmatprep.mubr.f32.mxu0 0.0
    %345 = vmatmul.mubr.f32.gmra.mrb[0].mxu0 %v63
    %v346 = vpop.f32.mrb[0].mxu0
    %v347 = vadd.f32 0.0, %v346
    %v348 = vpop.f32.mrb[0].mxu0
    %v349 = vadd.f32 0.0, %v348
    %350 = vmatprep.mubr.f32.mxu0 0.0
    %351 = vmatmul.mubr.f32.gmra.mrb[0].mxu0 %v66
    %v352 = vpop.f32.mrb[0].mxu0
    %v353 = vadd.f32 0.0, %v352
    %v354 = vpop.f32.mrb[0].mxu0
    %v355 = vadd.f32 0.0, %v354
    %356 = vmatprep.mubr.f32.mxu0 0.0
    %357 = vmatmul.mubr.f32.gmra.mrb[0].mxu0 %v69
    %v358 = vpop.f32.mrb[0].mxu0
    %v359 = vadd.f32 0.0, %v358
    %v360 = vpop.f32.mrb[0].mxu0
    %v361 = vadd.f32 0.0, %v360
    %362 = vmatprep.mubr.f32.mxu0 0.0
    %363 = vmatmul.mubr.f32.gmra.mrb[0].mxu0 %v72
    %v364 = vpop.f32.mrb[0].mxu0
    %v365 = vadd.f32 0.0, %v364
    %v366 = vpop.f32.mrb[0].mxu0
    %v367 = vadd.f32 0.0, %v366
    %368 = vmatprep.mubr.f32.mxu0 0.0
    %369 = vmatmul.mubr.f32.gmra.mrb[0].mxu0 %v75
    %v370 = vpop.f32.mrb[0].mxu0
    %v371 = vadd.f32 0.0, %v370
    %v372 = vpop.f32.mrb[0].mxu0
    %v373 = vadd.f32 0.0, %v372
    %374 = vmatprep.mubr.f32.mxu0 0.0
    %375 = vmatmul.mubr.f32.gmra.mrb[0].mxu0 %v78
    %v376 = vpop.f32.mrb[0].mxu0
    %v377 = vadd.f32 0.0, %v376
    %v378 = vpop.f32.mrb[0].mxu0
    %v379 = vadd.f32 0.0, %v378
    %380 = vmatprep.mubr.f32.mxu0 0.0
    %381 = vmatmul.mubr.f32.gmra.mrb[0].mxu0 %v81
    %v382 = vpop.f32.mrb[0].mxu0
    %v383 = vadd.f32 0.0, %v382
    %v384 = vpop.f32.mrb[0].mxu0
    %v385 = vadd.f32 0.0, %v384
    %386 = vmatprep.mubr.f32.mxu0 0.0
    %387 = vmatmul.mubr.f32.gmra.mrb[0].mxu0 %v84
    %v388 = vpop.f32.mrb[0].mxu0
    %v389 = vadd.f32 0.0, %v388
    %v390 = vpop.f32.mrb[0].mxu0
    %v391 = vadd.f32 0.0, %v390
    %392 = vmatprep.mubr.f32.mxu0 0.0
    %393 = vmatmul.mubr.f32.gmra.mrb[0].mxu0 %v87
    %v394 = vpop.f32.mrb[0].mxu0
    %v395 = vadd.f32 0.0, %v394
    %v396 = vpop.f32.mrb[0].mxu0
    %v397 = vadd.f32 0.0, %v396
    %398 = vmatprep.mubr.f32.mxu0 0.0
    %399 = vmatmul.mubr.f32.gmra.mrb[0].mxu0 %v90
    %v400 = vpop.f32.mrb[0].mxu0
    %v401 = vadd.f32 0.0, %v400
    %v402 = vpop.f32.mrb[0].mxu0
    %v403 = vadd.f32 0.0, %v402
    %404 = vmatprep.mubr.f32.mxu0 0.0
    %405 = vmatmul.mubr.f32.gmra.mrb[0].mxu0 %v93
    %v406 = vpop.f32.mrb[0].mxu0
    %v407 = vadd.f32 0.0, %v406
    %v408 = vpop.f32.mrb[0].mxu0
    %v409 = vadd.f32 0.0, %v408
    %410 = vmatprep.mubr.f32.mxu0 0.0
    %411 = vmatmul.mubr.f32.gmra.mrb[0].mxu0 %v96
    %v412 = vpop.f32.mrb[0].mxu0
    %v413 = vadd.f32 0.0, %v412
    %v414 = vpop.f32.mrb[0].mxu0
    %v415 = vadd.f32 0.0, %v414
    %416 = vmatprep.mubr.f32.mxu0 0.0
    %417 = vmatmul.mubr.f32.gmra.mrb[0].mxu0 %v99
    %v418 = vpop.f32.mrb[0].mxu0
    %v419 = vadd.f32 0.0, %v418
    %v420 = vpop.f32.mrb[0].mxu0
    %v421 = vadd.f32 0.0, %v420
    %422 = vmatprep.mubr.f32.mxu0 0.0
    %423 = vmatmul.mubr.f32.gmra.mrb[0].mxu0 %v102
    %v424 = vpop.f32.mrb[0].mxu0
    %v425 = vadd.f32 0.0, %v424
    %v426 = vpop.f32.mrb[0].mxu0
    %v427 = vadd.f32 0.0, %v426
    %428 = vmatprep.mubr.f32.mxu0 0.0
    %429 = vmatmul.mubr.f32.gmra.mrb[0].mxu0 %v105
    %v430 = vpop.f32.mrb[0].mxu0
    %v431 = vadd.f32 0.0, %v430
    %v432 = vpop.f32.mrb[0].mxu0
    %v433 = vadd.f32 0.0, %v432
    %434 = vmatprep.mubr.f32.mxu0 0.0
    %435 = vmatmul.mubr.f32.gmra.mrb[0].mxu0 %v108
    %v436 = vpop.f32.mrb[0].mxu0
    %v437 = vadd.f32 0.0, %v436
    %v438 = vpop.f32.mrb[0].mxu0
    %v439 = vadd.f32 0.0, %v438
    %440 = vdwg.mxu0
    %v441 = vmul.f32 %v186, 2.0
    %v442 = vmul.f32 %v188, 2.0
    %v443 = vmul.f32 %v347, 2.0
    %v444 = vmul.f32 %v349, 2.0
    %v445 = vmul.f32 %v192, 2.0
    %v446 = vmul.f32 %v194, 2.0
    %v447 = vmul.f32 %v353, 2.0
    %v448 = vmul.f32 %v355, 2.0
    %v449 = vmul.f32 %v198, 2.0
    %v450 = vmul.f32 %v200, 2.0
    %v451 = vmul.f32 %v359, 2.0
    %v452 = vmul.f32 %v361, 2.0
    %v453 = vmul.f32 %v204, 2.0
    %v454 = vmul.f32 %v206, 2.0
    %v455 = vmul.f32 %v365, 2.0
    %v456 = vmul.f32 %v367, 2.0
    %v457 = vmul.f32 %v210, 2.0
    %v458 = vmul.f32 %v212, 2.0
    %v459 = vmul.f32 %v371, 2.0
    %v460 = vmul.f32 %v373, 2.0
    %v461 = vmul.f32 %v216, 2.0
    %v462 = vmul.f32 %v218, 2.0
    %v463 = vmul.f32 %v377, 2.0
    %v464 = vmul.f32 %v379, 2.0
    %v465 = vmul.f32 %v222, 2.0
    %v466 = vmul.f32 %v224, 2.0
    %v467 = vmul.f32 %v383, 2.0
    %v468 = vmul.f32 %v385, 2.0
    %v469 = vmul.f32 %v228, 2.0
    %v470 = vmul.f32 %v230, 2.0
    %v471 = vmul.f32 %v389, 2.0
    %v472 = vmul.f32 %v391, 2.0
    %v473 = vmul.f32 %v234, 2.0
    %v474 = vmul.f32 %v236, 2.0
    %v475 = vmul.f32 %v395, 2.0
    %v476 = vmul.f32 %v397, 2.0
    %v477 = vmul.f32 %v240, 2.0
    %v478 = vmul.f32 %v242, 2.0
    %v479 = vmul.f32 %v401, 2.0
    %v480 = vmul.f32 %v403, 2.0
    %v481 = vmul.f32 %v246, 2.0
    %v482 = vmul.f32 %v248, 2.0
    %v483 = vmul.f32 %v407, 2.0
    %v484 = vmul.f32 %v409, 2.0
    %v485 = vmul.f32 %v252, 2.0
    %v486 = vmul.f32 %v254, 2.0
    %v487 = vmul.f32 %v413, 2.0
    %v488 = vmul.f32 %v415, 2.0
    %v489 = vmul.f32 %v258, 2.0
    %v490 = vmul.f32 %v260, 2.0
    %v491 = vmul.f32 %v419, 2.0
    %v492 = vmul.f32 %v421, 2.0
    %v493 = vmul.f32 %v264, 2.0
    %v494 = vmul.f32 %v266, 2.0
    %v495 = vmul.f32 %v425, 2.0
    %v496 = vmul.f32 %v427, 2.0
    %v497 = vmul.f32 %v270, 2.0
    %v498 = vmul.f32 %v272, 2.0
    %v499 = vmul.f32 %v431, 2.0
    %v500 = vmul.f32 %v433, 2.0
    %v501 = vmul.f32 %v276, 2.0
    %v502 = vmul.f32 %v278, 2.0
    %v503 = vmul.f32 %v437, 2.0
    %v504 = vmul.f32 %v439, 2.0
    %506 = vset.pattern.permute.xlu0 0
    %507 = vperm.xlu0 %506, %v41
    %v508 = vpop.permute.xlu0 %507
    %511 = vset.pattern.permute.xlu0 0
    %512 = vperm.xlu0 %511, %v42
    %v513 = vpop.permute.xlu0 %512
    %516 = vset.pattern.permute.xlu0 0
    %517 = vperm.xlu0 %516, %v43
    %v518 = vpop.permute.xlu0 %517
    %521 = vset.pattern.permute.xlu0 0
    %522 = vperm.xlu0 %521, %v44
    %v523 = vpop.permute.xlu0 %522
    %526 = vset.pattern.permute.xlu0 0
    %527 = vperm.xlu0 %526, %v45
    %v528 = vpop.permute.xlu0 %527
    %531 = vset.pattern.permute.xlu0 0
    %532 = vperm.xlu0 %531, %v46
    %v533 = vpop.permute.xlu0 %532
    %536 = vset.pattern.permute.xlu0 0
    %537 = vperm.xlu0 %536, %v47
    %v538 = vpop.permute.xlu0 %537
    %541 = vset.pattern.permute.xlu0 0
    %542 = vperm.xlu0 %541, %v48
    %v543 = vpop.permute.xlu0 %542
    %546 = vset.pattern.permute.xlu0 0
    %547 = vperm.xlu0 %546, %v49
    %v548 = vpop.permute.xlu0 %547
    %551 = vset.pattern.permute.xlu0 0
    %552 = vperm.xlu0 %551, %v50
    %v553 = vpop.permute.xlu0 %552
    %556 = vset.pattern.permute.xlu0 0
    %557 = vperm.xlu0 %556, %v51
    %v558 = vpop.permute.xlu0 %557
    %561 = vset.pattern.permute.xlu0 0
    %562 = vperm.xlu0 %561, %v52
    %v563 = vpop.permute.xlu0 %562
    %566 = vset.pattern.permute.xlu0 0
    %567 = vperm.xlu0 %566, %v53
    %v568 = vpop.permute.xlu0 %567
    %571 = vset.pattern.permute.xlu0 0
    %572 = vperm.xlu0 %571, %v54
    %v573 = vpop.permute.xlu0 %572
    %576 = vset.pattern.permute.xlu0 0
    %577 = vperm.xlu0 %576, %v55
    %v578 = vpop.permute.xlu0 %577
    %581 = vset.pattern.permute.xlu0 0
    %582 = vperm.xlu0 %581, %v56
    %v583 = vpop.permute.xlu0 %582
    %v585 = vsub.f32 %v508, %v441
    %v586 = vsub.f32 %v508, %v442
    %v587 = vsub.f32 %v508, %v443
    %v588 = vsub.f32 %v508, %v444
    %v589 = vsub.f32 %v513, %v445
    %v590 = vsub.f32 %v513, %v446
    %v591 = vsub.f32 %v513, %v447
    %v592 = vsub.f32 %v513, %v448
    %v593 = vsub.f32 %v518, %v449
    %v594 = vsub.f32 %v518, %v450
    %v595 = vsub.f32 %v518, %v451
    %v596 = vsub.f32 %v518, %v452
    %v597 = vsub.f32 %v523, %v453
    %v598 = vsub.f32 %v523, %v454
    %v599 = vsub.f32 %v523, %v455
    %v600 = vsub.f32 %v523, %v456
    %v601 = vsub.f32 %v528, %v457
    %v602 = vsub.f32 %v528, %v458
    %v603 = vsub.f32 %v528, %v459
    %v604 = vsub.f32 %v528, %v460
    %v605 = vsub.f32 %v533, %v461
    %v606 = vsub.f32 %v533, %v462
    %v607 = vsub.f32 %v533, %v463
    %v608 = vsub.f32 %v533, %v464
    %v609 = vsub.f32 %v538, %v465
    %v610 = vsub.f32 %v538, %v466
    %v611 = vsub.f32 %v538, %v467
    %v612 = vsub.f32 %v538, %v468
    %v613 = vsub.f32 %v543, %v469
    %v614 = vsub.f32 %v543, %v470
    %v615 = vsub.f32 %v543, %v471
    %v616 = vsub.f32 %v543, %v472
    %v617 = vsub.f32 %v548, %v473
    %v618 = vsub.f32 %v548, %v474
    %v619 = vsub.f32 %v548, %v475
    %v620 = vsub.f32 %v548, %v476
    %v621 = vsub.f32 %v553, %v477
    %v622 = vsub.f32 %v553, %v478
    %v623 = vsub.f32 %v553, %v479
    %v624 = vsub.f32 %v553, %v480
    %v625 = vsub.f32 %v558, %v481
    %v626 = vsub.f32 %v558, %v482
    %v627 = vsub.f32 %v558, %v483
    %v628 = vsub.f32 %v558, %v484
    %v629 = vsub.f32 %v563, %v485
    %v630 = vsub.f32 %v563, %v486
    %v631 = vsub.f32 %v563, %v487
    %v632 = vsub.f32 %v563, %v488
    %v633 = vsub.f32 %v568, %v489
    %v634 = vsub.f32 %v568, %v490
    %v635 = vsub.f32 %v568, %v491
    %v636 = vsub.f32 %v568, %v492
    %v637 = vsub.f32 %v573, %v493
    %v638 = vsub.f32 %v573, %v494
    %v639 = vsub.f32 %v573, %v495
    %v640 = vsub.f32 %v573, %v496
    %v641 = vsub.f32 %v578, %v497
    %v642 = vsub.f32 %v578, %v498
    %v643 = vsub.f32 %v578, %v499
    %v644 = vsub.f32 %v578, %v500
    %v645 = vsub.f32 %v583, %v501
    %v646 = vsub.f32 %v583, %v502
    %v647 = vsub.f32 %v583, %v503
    %v648 = vsub.f32 %v583, %v504
    %v649 = vmin.f32 %v585, %v589
    %v650 = vmin.f32 %v649, %v593
    %v651 = vmin.f32 %v650, %v597
    %v652 = vmin.f32 %v651, %v601
    %v653 = vmin.f32 %v652, %v605
    %v654 = vmin.f32 %v653, %v609
    %v655 = vmin.f32 %v654, %v613
    %v656 = vmin.f32 %v655, %v617
    %v657 = vmin.f32 %v656, %v621
    %v658 = vmin.f32 %v657, %v625
    %v659 = vmin.f32 %v658, %v629
    %v660 = vmin.f32 %v659, %v633
    %v661 = vmin.f32 %v660, %v637
    %v662 = vmin.f32 %v661, %v641
    %v663 = vmin.f32 %v662, %v645
    %v664 = vrot.slane %v663, 4
    %v665 = vmin.f32 %v663, %v664
    %v666 = vrot.slane %v665, 2
    %v667 = vmin.f32 %v665, %v666
    %v668 = vrot.slane %v667, 1
    %v669 = vmin.f32 %v667, %v668
    %v670 = vmin.f32 %v586, %v590
    %v671 = vmin.f32 %v670, %v594
    %v672 = vmin.f32 %v671, %v598
    %v673 = vmin.f32 %v672, %v602
    %v674 = vmin.f32 %v673, %v606
    %v675 = vmin.f32 %v674, %v610
    %v676 = vmin.f32 %v675, %v614
    %v677 = vmin.f32 %v676, %v618
    %v678 = vmin.f32 %v677, %v622
    %v679 = vmin.f32 %v678, %v626
    %v680 = vmin.f32 %v679, %v630
    %v681 = vmin.f32 %v680, %v634
    %v682 = vmin.f32 %v681, %v638
    %v683 = vmin.f32 %v682, %v642
    %v684 = vmin.f32 %v683, %v646
    %v685 = vrot.slane %v684, 4
    %v686 = vmin.f32 %v684, %v685
    %v687 = vrot.slane %v686, 2
    %v688 = vmin.f32 %v686, %v687
    %v689 = vrot.slane %v688, 1
    %v690 = vmin.f32 %v688, %v689
    %v691 = vmin.f32 %v587, %v591
    %v692 = vmin.f32 %v691, %v595
    %v693 = vmin.f32 %v692, %v599
    %v694 = vmin.f32 %v693, %v603
    %v695 = vmin.f32 %v694, %v607
    %v696 = vmin.f32 %v695, %v611
    %v697 = vmin.f32 %v696, %v615
    %v698 = vmin.f32 %v697, %v619
    %v699 = vmin.f32 %v698, %v623
    %v700 = vmin.f32 %v699, %v627
    %v701 = vmin.f32 %v700, %v631
    %v702 = vmin.f32 %v701, %v635
    %v703 = vmin.f32 %v702, %v639
    %v704 = vmin.f32 %v703, %v643
    %v705 = vmin.f32 %v704, %v647
    %v706 = vrot.slane %v705, 4
    %v707 = vmin.f32 %v705, %v706
    %v708 = vrot.slane %v707, 2
    %v709 = vmin.f32 %v707, %v708
    %v710 = vrot.slane %v709, 1
    %v711 = vmin.f32 %v709, %v710
    %v712 = vmin.f32 %v588, %v592
    %v713 = vmin.f32 %v712, %v596
    %v714 = vmin.f32 %v713, %v600
    %v715 = vmin.f32 %v714, %v604
    %v716 = vmin.f32 %v715, %v608
    %v717 = vmin.f32 %v716, %v612
    %v718 = vmin.f32 %v717, %v616
    %v719 = vmin.f32 %v718, %v620
    %v720 = vmin.f32 %v719, %v624
    %v721 = vmin.f32 %v720, %v628
    %v722 = vmin.f32 %v721, %v632
    %v723 = vmin.f32 %v722, %v636
    %v724 = vmin.f32 %v723, %v640
    %v725 = vmin.f32 %v724, %v644
    %v726 = vmin.f32 %v725, %v648
    %v727 = vrot.slane %v726, 4
    %v728 = vmin.f32 %v726, %v727
    %v729 = vrot.slane %v728, 2
    %v730 = vmin.f32 %v728, %v729
    %v731 = vrot.slane %v730, 1
    %v732 = vmin.f32 %v730, %v731
    %v733 = vlaneseq
    %v734 = vshrl.u32 %v733, 7
    %v735 = vadd.s32 %v734, 8
    %v736 = vadd.s32 %v734, 16
    %v737 = vadd.s32 %v734, 24
    %v738 = vadd.s32 %v734, 32
    %v739 = vadd.s32 %v734, 40
    %v740 = vadd.s32 %v734, 48
    %v741 = vadd.s32 %v734, 56
    %v742 = vadd.s32 %v734, 64
    %v743 = vadd.s32 %v734, 72
    %v744 = vadd.s32 %v734, 80
    %v745 = vadd.s32 %v734, 88
    %v746 = vadd.s32 %v734, 96
    %v747 = vadd.s32 %v734, 104
    %v748 = vadd.s32 %v734, 112
    %v749 = vadd.s32 %v734, 120
    %vm750 = vcmp.eq.f32.partialorder %v585, %v669
    %vm751 = vcmp.eq.f32.partialorder %v586, %v690
    %vm752 = vcmp.eq.f32.partialorder %v587, %v711
    %vm753 = vcmp.eq.f32.partialorder %v588, %v732
    %vm754 = vcmp.eq.f32.partialorder %v589, %v669
    %vm755 = vcmp.eq.f32.partialorder %v590, %v690
    %vm756 = vcmp.eq.f32.partialorder %v591, %v711
    %vm757 = vcmp.eq.f32.partialorder %v592, %v732
    %vm758 = vcmp.eq.f32.partialorder %v593, %v669
    %vm759 = vcmp.eq.f32.partialorder %v594, %v690
    %vm760 = vcmp.eq.f32.partialorder %v595, %v711
    %vm761 = vcmp.eq.f32.partialorder %v596, %v732
    %vm762 = vcmp.eq.f32.partialorder %v597, %v669
    %vm763 = vcmp.eq.f32.partialorder %v598, %v690
    %vm764 = vcmp.eq.f32.partialorder %v599, %v711
    %vm765 = vcmp.eq.f32.partialorder %v600, %v732
    %vm766 = vcmp.eq.f32.partialorder %v601, %v669
    %vm767 = vcmp.eq.f32.partialorder %v602, %v690
    %vm768 = vcmp.eq.f32.partialorder %v603, %v711
    %vm769 = vcmp.eq.f32.partialorder %v604, %v732
    %vm770 = vcmp.eq.f32.partialorder %v605, %v669
    %vm771 = vcmp.eq.f32.partialorder %v606, %v690
    %vm772 = vcmp.eq.f32.partialorder %v607, %v711
    %vm773 = vcmp.eq.f32.partialorder %v608, %v732
    %vm774 = vcmp.eq.f32.partialorder %v609, %v669
    %vm775 = vcmp.eq.f32.partialorder %v610, %v690
    %vm776 = vcmp.eq.f32.partialorder %v611, %v711
    %vm777 = vcmp.eq.f32.partialorder %v612, %v732
    %vm778 = vcmp.eq.f32.partialorder %v613, %v669
    %vm779 = vcmp.eq.f32.partialorder %v614, %v690
    %vm780 = vcmp.eq.f32.partialorder %v615, %v711
    %vm781 = vcmp.eq.f32.partialorder %v616, %v732
    %vm782 = vcmp.eq.f32.partialorder %v617, %v669
    %vm783 = vcmp.eq.f32.partialorder %v618, %v690
    %vm784 = vcmp.eq.f32.partialorder %v619, %v711
    %vm785 = vcmp.eq.f32.partialorder %v620, %v732
    %vm786 = vcmp.eq.f32.partialorder %v621, %v669
    %vm787 = vcmp.eq.f32.partialorder %v622, %v690
    %vm788 = vcmp.eq.f32.partialorder %v623, %v711
    %vm789 = vcmp.eq.f32.partialorder %v624, %v732
    %vm790 = vcmp.eq.f32.partialorder %v625, %v669
    %vm791 = vcmp.eq.f32.partialorder %v626, %v690
    %vm792 = vcmp.eq.f32.partialorder %v627, %v711
    %vm793 = vcmp.eq.f32.partialorder %v628, %v732
    %vm794 = vcmp.eq.f32.partialorder %v629, %v669
    %vm795 = vcmp.eq.f32.partialorder %v630, %v690
    %vm796 = vcmp.eq.f32.partialorder %v631, %v711
    %vm797 = vcmp.eq.f32.partialorder %v632, %v732
    %vm798 = vcmp.eq.f32.partialorder %v633, %v669
    %vm799 = vcmp.eq.f32.partialorder %v634, %v690
    %vm800 = vcmp.eq.f32.partialorder %v635, %v711
    %vm801 = vcmp.eq.f32.partialorder %v636, %v732
    %vm802 = vcmp.eq.f32.partialorder %v637, %v669
    %vm803 = vcmp.eq.f32.partialorder %v638, %v690
    %vm804 = vcmp.eq.f32.partialorder %v639, %v711
    %vm805 = vcmp.eq.f32.partialorder %v640, %v732
    %vm806 = vcmp.eq.f32.partialorder %v641, %v669
    %vm807 = vcmp.eq.f32.partialorder %v642, %v690
    %vm808 = vcmp.eq.f32.partialorder %v643, %v711
    %vm809 = vcmp.eq.f32.partialorder %v644, %v732
    %vm810 = vcmp.eq.f32.partialorder %v645, %v669
    %vm811 = vcmp.eq.f32.partialorder %v646, %v690
    %vm812 = vcmp.eq.f32.partialorder %v647, %v711
    %vm813 = vcmp.eq.f32.partialorder %v648, %v732
    %v814 = vsel %vm750, %v734, 128
    %v815 = vsel %vm751, %v734, 128
    %v816 = vsel %vm752, %v734, 128
    %v817 = vsel %vm753, %v734, 128
    %v818 = vsel %vm754, %v735, 128
    %v819 = vsel %vm755, %v735, 128
    %v820 = vsel %vm756, %v735, 128
    %v821 = vsel %vm757, %v735, 128
    %v822 = vsel %vm758, %v736, 128
    %v823 = vsel %vm759, %v736, 128
    %v824 = vsel %vm760, %v736, 128
    %v825 = vsel %vm761, %v736, 128
    %v826 = vsel %vm762, %v737, 128
    %v827 = vsel %vm763, %v737, 128
    %v828 = vsel %vm764, %v737, 128
    %v829 = vsel %vm765, %v737, 128
    %v830 = vsel %vm766, %v738, 128
    %v831 = vsel %vm767, %v738, 128
    %v832 = vsel %vm768, %v738, 128
    %v833 = vsel %vm769, %v738, 128
    %v834 = vsel %vm770, %v739, 128
    %v835 = vsel %vm771, %v739, 128
    %v836 = vsel %vm772, %v739, 128
    %v837 = vsel %vm773, %v739, 128
    %v838 = vsel %vm774, %v740, 128
    %v839 = vsel %vm775, %v740, 128
    %v840 = vsel %vm776, %v740, 128
    %v841 = vsel %vm777, %v740, 128
    %v842 = vsel %vm778, %v741, 128
    %v843 = vsel %vm779, %v741, 128
    %v844 = vsel %vm780, %v741, 128
    %v845 = vsel %vm781, %v741, 128
    %v846 = vsel %vm782, %v742, 128
    %v847 = vsel %vm783, %v742, 128
    %v848 = vsel %vm784, %v742, 128
    %v849 = vsel %vm785, %v742, 128
    %v850 = vsel %vm786, %v743, 128
    %v851 = vsel %vm787, %v743, 128
    %v852 = vsel %vm788, %v743, 128
    %v853 = vsel %vm789, %v743, 128
    %v854 = vsel %vm790, %v744, 128
    %v855 = vsel %vm791, %v744, 128
    %v856 = vsel %vm792, %v744, 128
    %v857 = vsel %vm793, %v744, 128
    %v858 = vsel %vm794, %v745, 128
    %v859 = vsel %vm795, %v745, 128
    %v860 = vsel %vm796, %v745, 128
    %v861 = vsel %vm797, %v745, 128
    %v862 = vsel %vm798, %v746, 128
    %v863 = vsel %vm799, %v746, 128
    %v864 = vsel %vm800, %v746, 128
    %v865 = vsel %vm801, %v746, 128
    %v866 = vsel %vm802, %v747, 128
    %v867 = vsel %vm803, %v747, 128
    %v868 = vsel %vm804, %v747, 128
    %v869 = vsel %vm805, %v747, 128
    %v870 = vsel %vm806, %v748, 128
    %v871 = vsel %vm807, %v748, 128
    %v872 = vsel %vm808, %v748, 128
    %v873 = vsel %vm809, %v748, 128
    %v874 = vsel %vm810, %v749, 128
    %v875 = vsel %vm811, %v749, 128
    %v876 = vsel %vm812, %v749, 128
    %v877 = vsel %vm813, %v749, 128
    %vm878 = vcmp.lt.s32.totalorder %v814, %v818
    %v879 = vsel %vm878, %v814, %v818
    %vm880 = vcmp.lt.s32.totalorder %v879, %v822
    %v881 = vsel %vm880, %v879, %v822
    %vm882 = vcmp.lt.s32.totalorder %v881, %v826
    %v883 = vsel %vm882, %v881, %v826
    %vm884 = vcmp.lt.s32.totalorder %v883, %v830
    %v885 = vsel %vm884, %v883, %v830
    %vm886 = vcmp.lt.s32.totalorder %v885, %v834
    %v887 = vsel %vm886, %v885, %v834
    %vm888 = vcmp.lt.s32.totalorder %v887, %v838
    %v889 = vsel %vm888, %v887, %v838
    %vm890 = vcmp.lt.s32.totalorder %v889, %v842
    %v891 = vsel %vm890, %v889, %v842
    %vm892 = vcmp.lt.s32.totalorder %v891, %v846
    %v893 = vsel %vm892, %v891, %v846
    %vm894 = vcmp.lt.s32.totalorder %v893, %v850
    %v895 = vsel %vm894, %v893, %v850
    %vm896 = vcmp.lt.s32.totalorder %v895, %v854
    %v897 = vsel %vm896, %v895, %v854
    %vm898 = vcmp.lt.s32.totalorder %v897, %v858
    %v899 = vsel %vm898, %v897, %v858
    %vm900 = vcmp.lt.s32.totalorder %v899, %v862
    %v901 = vsel %vm900, %v899, %v862
    %vm902 = vcmp.lt.s32.totalorder %v901, %v866
    %v903 = vsel %vm902, %v901, %v866
    %vm904 = vcmp.lt.s32.totalorder %v903, %v870
    %v905 = vsel %vm904, %v903, %v870
    %vm906 = vcmp.lt.s32.totalorder %v905, %v874
    %v907 = vsel %vm906, %v905, %v874
    %v908 = vrot.slane %v907, 4
    %vm909 = vcmp.lt.s32.totalorder %v907, %v908
    %v910 = vsel %vm909, %v907, %v908
    %v911 = vrot.slane %v910, 2
    %vm912 = vcmp.lt.s32.totalorder %v910, %v911
    %v913 = vsel %vm912, %v910, %v911
    %v914 = vrot.slane %v913, 1
    %vm915 = vcmp.lt.s32.totalorder %v913, %v914
    %v916 = vsel %vm915, %v913, %v914
    %vm917 = vcmp.lt.s32.totalorder %v815, %v819
    %v918 = vsel %vm917, %v815, %v819
    %vm919 = vcmp.lt.s32.totalorder %v918, %v823
    %v920 = vsel %vm919, %v918, %v823
    %vm921 = vcmp.lt.s32.totalorder %v920, %v827
    %v922 = vsel %vm921, %v920, %v827
    %vm923 = vcmp.lt.s32.totalorder %v922, %v831
    %v924 = vsel %vm923, %v922, %v831
    %vm925 = vcmp.lt.s32.totalorder %v924, %v835
    %v926 = vsel %vm925, %v924, %v835
    %vm927 = vcmp.lt.s32.totalorder %v926, %v839
    %v928 = vsel %vm927, %v926, %v839
    %vm929 = vcmp.lt.s32.totalorder %v928, %v843
    %v930 = vsel %vm929, %v928, %v843
    %vm931 = vcmp.lt.s32.totalorder %v930, %v847
    %v932 = vsel %vm931, %v930, %v847
    %vm933 = vcmp.lt.s32.totalorder %v932, %v851
    %v934 = vsel %vm933, %v932, %v851
    %vm935 = vcmp.lt.s32.totalorder %v934, %v855
    %v936 = vsel %vm935, %v934, %v855
    %vm937 = vcmp.lt.s32.totalorder %v936, %v859
    %v938 = vsel %vm937, %v936, %v859
    %vm939 = vcmp.lt.s32.totalorder %v938, %v863
    %v940 = vsel %vm939, %v938, %v863
    %vm941 = vcmp.lt.s32.totalorder %v940, %v867
    %v942 = vsel %vm941, %v940, %v867
    %vm943 = vcmp.lt.s32.totalorder %v942, %v871
    %v944 = vsel %vm943, %v942, %v871
    %vm945 = vcmp.lt.s32.totalorder %v944, %v875
    %v946 = vsel %vm945, %v944, %v875
    %v947 = vrot.slane %v946, 4
    %vm948 = vcmp.lt.s32.totalorder %v946, %v947
    %v949 = vsel %vm948, %v946, %v947
    %v950 = vrot.slane %v949, 2
    %vm951 = vcmp.lt.s32.totalorder %v949, %v950
    %v952 = vsel %vm951, %v949, %v950
    %v953 = vrot.slane %v952, 1
    %vm954 = vcmp.lt.s32.totalorder %v952, %v953
    %v955 = vsel %vm954, %v952, %v953
    %vm956 = vcmp.lt.s32.totalorder %v816, %v820
    %v957 = vsel %vm956, %v816, %v820
    %vm958 = vcmp.lt.s32.totalorder %v957, %v824
    %v959 = vsel %vm958, %v957, %v824
    %vm960 = vcmp.lt.s32.totalorder %v959, %v828
    %v961 = vsel %vm960, %v959, %v828
    %vm962 = vcmp.lt.s32.totalorder %v961, %v832
    %v963 = vsel %vm962, %v961, %v832
    %vm964 = vcmp.lt.s32.totalorder %v963, %v836
    %v965 = vsel %vm964, %v963, %v836
    %vm966 = vcmp.lt.s32.totalorder %v965, %v840
    %v967 = vsel %vm966, %v965, %v840
    %vm968 = vcmp.lt.s32.totalorder %v967, %v844
    %v969 = vsel %vm968, %v967, %v844
    %vm970 = vcmp.lt.s32.totalorder %v969, %v848
    %v971 = vsel %vm970, %v969, %v848
    %vm972 = vcmp.lt.s32.totalorder %v971, %v852
    %v973 = vsel %vm972, %v971, %v852
    %vm974 = vcmp.lt.s32.totalorder %v973, %v856
    %v975 = vsel %vm974, %v973, %v856
    %vm976 = vcmp.lt.s32.totalorder %v975, %v860
    %v977 = vsel %vm976, %v975, %v860
    %vm978 = vcmp.lt.s32.totalorder %v977, %v864
    %v979 = vsel %vm978, %v977, %v864
    %vm980 = vcmp.lt.s32.totalorder %v979, %v868
    %v981 = vsel %vm980, %v979, %v868
    %vm982 = vcmp.lt.s32.totalorder %v981, %v872
    %v983 = vsel %vm982, %v981, %v872
    %vm984 = vcmp.lt.s32.totalorder %v983, %v876
    %v985 = vsel %vm984, %v983, %v876
    %v986 = vrot.slane %v985, 4
    %vm987 = vcmp.lt.s32.totalorder %v985, %v986
    %v988 = vsel %vm987, %v985, %v986
    %v989 = vrot.slane %v988, 2
    %vm990 = vcmp.lt.s32.totalorder %v988, %v989
    %v991 = vsel %vm990, %v988, %v989
    %v992 = vrot.slane %v991, 1
    %vm993 = vcmp.lt.s32.totalorder %v991, %v992
    %v994 = vsel %vm993, %v991, %v992
    %vm995 = vcmp.lt.s32.totalorder %v817, %v821
    %v996 = vsel %vm995, %v817, %v821
    %vm997 = vcmp.lt.s32.totalorder %v996, %v825
    %v998 = vsel %vm997, %v996, %v825
    %vm999 = vcmp.lt.s32.totalorder %v998, %v829
    %v1000 = vsel %vm999, %v998, %v829
    %vm1001 = vcmp.lt.s32.totalorder %v1000, %v833
    %v1002 = vsel %vm1001, %v1000, %v833
    %vm1003 = vcmp.lt.s32.totalorder %v1002, %v837
    %v1004 = vsel %vm1003, %v1002, %v837
    %vm1005 = vcmp.lt.s32.totalorder %v1004, %v841
    %v1006 = vsel %vm1005, %v1004, %v841
    %vm1007 = vcmp.lt.s32.totalorder %v1006, %v845
    %v1008 = vsel %vm1007, %v1006, %v845
    %vm1009 = vcmp.lt.s32.totalorder %v1008, %v849
    %v1010 = vsel %vm1009, %v1008, %v849
    %vm1011 = vcmp.lt.s32.totalorder %v1010, %v853
    %v1012 = vsel %vm1011, %v1010, %v853
    %vm1013 = vcmp.lt.s32.totalorder %v1012, %v857
    %v1014 = vsel %vm1013, %v1012, %v857
    %vm1015 = vcmp.lt.s32.totalorder %v1014, %v861
    %v1016 = vsel %vm1015, %v1014, %v861
    %vm1017 = vcmp.lt.s32.totalorder %v1016, %v865
    %v1018 = vsel %vm1017, %v1016, %v865
    %vm1019 = vcmp.lt.s32.totalorder %v1018, %v869
    %v1020 = vsel %vm1019, %v1018, %v869
    %vm1021 = vcmp.lt.s32.totalorder %v1020, %v873
    %v1022 = vsel %vm1021, %v1020, %v873
    %vm1023 = vcmp.lt.s32.totalorder %v1022, %v877
    %v1024 = vsel %vm1023, %v1022, %v877
    %v1025 = vrot.slane %v1024, 4
    %vm1026 = vcmp.lt.s32.totalorder %v1024, %v1025
    %v1027 = vsel %vm1026, %v1024, %v1025
    %v1028 = vrot.slane %v1027, 2
    %vm1029 = vcmp.lt.s32.totalorder %v1027, %v1028
    %v1030 = vsel %vm1029, %v1027, %v1028
    %v1031 = vrot.slane %v1030, 1
    %vm1032 = vcmp.lt.s32.totalorder %v1030, %v1031
    %v1033 = vsel %vm1032, %v1030, %v1031
    %v1034 = vcombine.low %v916, %v955
    %v1035 = vcombine.low %v994, %v1033
    %v1037 = vunpack.c.l.s4 1966171168
    %v1038 = vunpack.c.0.s8 %v1037
    %v1039 = vlaneseq
    %v1040 = vshrl.u32 %v1039, 7
    %v1041 = vsub.s32 %v1038, %v1040
    %v1042 = vrot.slane %v1034, %v1041
    %v1044 = vunpack.c.l.s4 1966171168
    %v1045 = vunpack.c.0.s8 %v1044
    %v1046 = vlaneseq
    %v1047 = vshrl.u32 %v1046, 7
    %v1048 = vsub.s32 %v1045, %v1047
    %v1049 = vrot.slane %v1035, %v1048
    %v1050 = vcombine.low %v1042, %v1049
    %v1052 = vunpack.c.l.s4 1966171168
    %v1053 = vunpack.c.0.s8 %v1052
    %v1054 = vlaneseq
    %v1055 = vshrl.u32 %v1054, 7
    %v1056 = vsub.s32 %v1053, %v1055
    %v1057 = vrot.slane %v1050, %v1056
    %v1058 = vlaneseq
    %vm1059 = vcmp.ge.s32.totalorder %v1058, 0
    %vm1060 = vcmp.lt.s32.totalorder %v1058, 512
    %vm1061 = vmand %vm1059, %vm1060
    %1062 = vst.msk [vmem:[#allocation4] sm:$0xf] %vm1061, %v1057
    %vm1063 = vcmp.eq.s32.totalorder %v734, %v916
    %vm1064 = vcmp.eq.s32.totalorder %v734, %v955
    %vm1065 = vcmp.eq.s32.totalorder %v734, %v994
    %vm1066 = vcmp.eq.s32.totalorder %v734, %v1033
    %vm1067 = vcmp.eq.s32.totalorder %v735, %v916
    %vm1068 = vcmp.eq.s32.totalorder %v735, %v955
    %vm1069 = vcmp.eq.s32.totalorder %v735, %v994
    %vm1070 = vcmp.eq.s32.totalorder %v735, %v1033
    %vm1071 = vcmp.eq.s32.totalorder %v736, %v916
    %vm1072 = vcmp.eq.s32.totalorder %v736, %v955
    %vm1073 = vcmp.eq.s32.totalorder %v736, %v994
    %vm1074 = vcmp.eq.s32.totalorder %v736, %v1033
    %vm1075 = vcmp.eq.s32.totalorder %v737, %v916
    %vm1076 = vcmp.eq.s32.totalorder %v737, %v955
    %vm1077 = vcmp.eq.s32.totalorder %v737, %v994
    %vm1078 = vcmp.eq.s32.totalorder %v737, %v1033
    %vm1079 = vcmp.eq.s32.totalorder %v738, %v916
    %vm1080 = vcmp.eq.s32.totalorder %v738, %v955
    %vm1081 = vcmp.eq.s32.totalorder %v738, %v994
    %vm1082 = vcmp.eq.s32.totalorder %v738, %v1033
    %vm1083 = vcmp.eq.s32.totalorder %v739, %v916
    %vm1084 = vcmp.eq.s32.totalorder %v739, %v955
    %vm1085 = vcmp.eq.s32.totalorder %v739, %v994
    %vm1086 = vcmp.eq.s32.totalorder %v739, %v1033
    %vm1087 = vcmp.eq.s32.totalorder %v740, %v916
    %vm1088 = vcmp.eq.s32.totalorder %v740, %v955
    %vm1089 = vcmp.eq.s32.totalorder %v740, %v994
    %vm1090 = vcmp.eq.s32.totalorder %v740, %v1033
    %vm1091 = vcmp.eq.s32.totalorder %v741, %v916
    %vm1092 = vcmp.eq.s32.totalorder %v741, %v955
    %vm1093 = vcmp.eq.s32.totalorder %v741, %v994
    %vm1094 = vcmp.eq.s32.totalorder %v741, %v1033
    %vm1095 = vcmp.eq.s32.totalorder %v742, %v916
    %vm1096 = vcmp.eq.s32.totalorder %v742, %v955
    %vm1097 = vcmp.eq.s32.totalorder %v742, %v994
    %vm1098 = vcmp.eq.s32.totalorder %v742, %v1033
    %vm1099 = vcmp.eq.s32.totalorder %v743, %v916
    %vm1100 = vcmp.eq.s32.totalorder %v743, %v955
    %vm1101 = vcmp.eq.s32.totalorder %v743, %v994
    %vm1102 = vcmp.eq.s32.totalorder %v743, %v1033
    %vm1103 = vcmp.eq.s32.totalorder %v744, %v916
    %vm1104 = vcmp.eq.s32.totalorder %v744, %v955
    %vm1105 = vcmp.eq.s32.totalorder %v744, %v994
    %vm1106 = vcmp.eq.s32.totalorder %v744, %v1033
    %vm1107 = vcmp.eq.s32.totalorder %v745, %v916
    %vm1108 = vcmp.eq.s32.totalorder %v745, %v955
    %vm1109 = vcmp.eq.s32.totalorder %v745, %v994
    %vm1110 = vcmp.eq.s32.totalorder %v745, %v1033
    %vm1111 = vcmp.eq.s32.totalorder %v746, %v916
    %vm1112 = vcmp.eq.s32.totalorder %v746, %v955
    %vm1113 = vcmp.eq.s32.totalorder %v746, %v994
    %vm1114 = vcmp.eq.s32.totalorder %v746, %v1033
    %vm1115 = vcmp.eq.s32.totalorder %v747, %v916
    %vm1116 = vcmp.eq.s32.totalorder %v747, %v955
    %vm1117 = vcmp.eq.s32.totalorder %v747, %v994
    %vm1118 = vcmp.eq.s32.totalorder %v747, %v1033
    %vm1119 = vcmp.eq.s32.totalorder %v748, %v916
    %vm1120 = vcmp.eq.s32.totalorder %v748, %v955
    %vm1121 = vcmp.eq.s32.totalorder %v748, %v994
    %vm1122 = vcmp.eq.s32.totalorder %v748, %v1033
    %vm1123 = vcmp.eq.s32.totalorder %v749, %v916
    %vm1124 = vcmp.eq.s32.totalorder %v749, %v955
    %vm1125 = vcmp.eq.s32.totalorder %v749, %v994
    %vm1126 = vcmp.eq.s32.totalorder %v749, %v1033
    %v1127 = vsel %vm1063, 1, 0
    %v1128 = vsel %vm1064, 1, 0
    %v1129 = vsel %vm1065, 1, 0
    %v1130 = vsel %vm1066, 1, 0
    %v1131 = vsel %vm1067, 1, 0
    %v1132 = vsel %vm1068, 1, 0
    %v1133 = vsel %vm1069, 1, 0
    %v1134 = vsel %vm1070, 1, 0
    %v1135 = vsel %vm1071, 1, 0
    %v1136 = vsel %vm1072, 1, 0
    %v1137 = vsel %vm1073, 1, 0
    %v1138 = vsel %vm1074, 1, 0
    %v1139 = vsel %vm1075, 1, 0
    %v1140 = vsel %vm1076, 1, 0
    %v1141 = vsel %vm1077, 1, 0
    %v1142 = vsel %vm1078, 1, 0
    %v1143 = vsel %vm1079, 1, 0
    %v1144 = vsel %vm1080, 1, 0
    %v1145 = vsel %vm1081, 1, 0
    %v1146 = vsel %vm1082, 1, 0
    %v1147 = vsel %vm1083, 1, 0
    %v1148 = vsel %vm1084, 1, 0
    %v1149 = vsel %vm1085, 1, 0
    %v1150 = vsel %vm1086, 1, 0
    %v1151 = vsel %vm1087, 1, 0
    %v1152 = vsel %vm1088, 1, 0
    %v1153 = vsel %vm1089, 1, 0
    %v1154 = vsel %vm1090, 1, 0
    %v1155 = vsel %vm1091, 1, 0
    %v1156 = vsel %vm1092, 1, 0
    %v1157 = vsel %vm1093, 1, 0
    %v1158 = vsel %vm1094, 1, 0
    %v1159 = vsel %vm1095, 1, 0
    %v1160 = vsel %vm1096, 1, 0
    %v1161 = vsel %vm1097, 1, 0
    %v1162 = vsel %vm1098, 1, 0
    %v1163 = vsel %vm1099, 1, 0
    %v1164 = vsel %vm1100, 1, 0
    %v1165 = vsel %vm1101, 1, 0
    %v1166 = vsel %vm1102, 1, 0
    %v1167 = vsel %vm1103, 1, 0
    %v1168 = vsel %vm1104, 1, 0
    %v1169 = vsel %vm1105, 1, 0
    %v1170 = vsel %vm1106, 1, 0
    %v1171 = vsel %vm1107, 1, 0
    %v1172 = vsel %vm1108, 1, 0
    %v1173 = vsel %vm1109, 1, 0
    %v1174 = vsel %vm1110, 1, 0
    %v1175 = vsel %vm1111, 1, 0
    %v1176 = vsel %vm1112, 1, 0
    %v1177 = vsel %vm1113, 1, 0
    %v1178 = vsel %vm1114, 1, 0
    %v1179 = vsel %vm1115, 1, 0
    %v1180 = vsel %vm1116, 1, 0
    %v1181 = vsel %vm1117, 1, 0
    %v1182 = vsel %vm1118, 1, 0
    %v1183 = vsel %vm1119, 1, 0
    %v1184 = vsel %vm1120, 1, 0
    %v1185 = vsel %vm1121, 1, 0
    %v1186 = vsel %vm1122, 1, 0
    %v1187 = vsel %vm1123, 1, 0
    %v1188 = vsel %vm1124, 1, 0
    %v1189 = vsel %vm1125, 1, 0
    %v1190 = vsel %vm1126, 1, 0
    %v1191 = vcvt.s32.f32 %v1127
    %v1192 = vcvt.s32.f32 %v1128
    %v1193 = vcvt.s32.f32 %v1129
    %v1194 = vcvt.s32.f32 %v1130
    %v1195 = vcvt.s32.f32 %v1131
    %v1196 = vcvt.s32.f32 %v1132
    %v1197 = vcvt.s32.f32 %v1133
    %v1198 = vcvt.s32.f32 %v1134
    %v1199 = vcvt.s32.f32 %v1135
    %v1200 = vcvt.s32.f32 %v1136
    %v1201 = vcvt.s32.f32 %v1137
    %v1202 = vcvt.s32.f32 %v1138
    %v1203 = vcvt.s32.f32 %v1139
    %v1204 = vcvt.s32.f32 %v1140
    %v1205 = vcvt.s32.f32 %v1141
    %v1206 = vcvt.s32.f32 %v1142
    %v1207 = vcvt.s32.f32 %v1143
    %v1208 = vcvt.s32.f32 %v1144
    %v1209 = vcvt.s32.f32 %v1145
    %v1210 = vcvt.s32.f32 %v1146
    %v1211 = vcvt.s32.f32 %v1147
    %v1212 = vcvt.s32.f32 %v1148
    %v1213 = vcvt.s32.f32 %v1149
    %v1214 = vcvt.s32.f32 %v1150
    %v1215 = vcvt.s32.f32 %v1151
    %v1216 = vcvt.s32.f32 %v1152
    %v1217 = vcvt.s32.f32 %v1153
    %v1218 = vcvt.s32.f32 %v1154
    %v1219 = vcvt.s32.f32 %v1155
    %v1220 = vcvt.s32.f32 %v1156
    %v1221 = vcvt.s32.f32 %v1157
    %v1222 = vcvt.s32.f32 %v1158
    %v1223 = vcvt.s32.f32 %v1159
    %v1224 = vcvt.s32.f32 %v1160
    %v1225 = vcvt.s32.f32 %v1161
    %v1226 = vcvt.s32.f32 %v1162
    %v1227 = vcvt.s32.f32 %v1163
    %v1228 = vcvt.s32.f32 %v1164
    %v1229 = vcvt.s32.f32 %v1165
    %v1230 = vcvt.s32.f32 %v1166
    %v1231 = vcvt.s32.f32 %v1167
    %v1232 = vcvt.s32.f32 %v1168
    %v1233 = vcvt.s32.f32 %v1169
    %v1234 = vcvt.s32.f32 %v1170
    %v1235 = vcvt.s32.f32 %v1171
    %v1236 = vcvt.s32.f32 %v1172
    %v1237 = vcvt.s32.f32 %v1173
    %v1238 = vcvt.s32.f32 %v1174
    %v1239 = vcvt.s32.f32 %v1175
    %v1240 = vcvt.s32.f32 %v1176
    %v1241 = vcvt.s32.f32 %v1177
    %v1242 = vcvt.s32.f32 %v1178
    %v1243 = vcvt.s32.f32 %v1179
    %v1244 = vcvt.s32.f32 %v1180
    %v1245 = vcvt.s32.f32 %v1181
    %v1246 = vcvt.s32.f32 %v1182
    %v1247 = vcvt.s32.f32 %v1183
    %v1248 = vcvt.s32.f32 %v1184
    %v1249 = vcvt.s32.f32 %v1185
    %v1250 = vcvt.s32.f32 %v1186
    %v1251 = vcvt.s32.f32 %v1187
    %v1252 = vcvt.s32.f32 %v1188
    %v1253 = vcvt.s32.f32 %v1189
    %v1254 = vcvt.s32.f32 %v1190
    %1255 = vmatprep.subr.mxu0 %v1192
    %1256 = vmatpush1.msra.mxu0 %v1191
    %1257 = vmatprep.subr.mxu0 %v1196
    %1258 = vmatpush1.msra.mxu0 %v1195
    %1259 = vmatprep.subr.mxu0 %v1200
    %1260 = vmatpush1.msra.mxu0 %v1199
    %1261 = vmatprep.subr.mxu0 %v1204
    %1262 = vmatpush1.msra.mxu0 %v1203
    %1263 = vmatprep.subr.mxu0 %v1208
    %1264 = vmatpush1.msra.mxu0 %v1207
    %1265 = vmatprep.subr.mxu0 %v1212
    %1266 = vmatpush1.msra.mxu0 %v1211
    %1267 = vmatprep.subr.mxu0 %v1216
    %1268 = vmatpush1.msra.mxu0 %v1215
    %1269 = vmatprep.subr.mxu0 %v1220
    %1270 = vmatpush1.msra.mxu0 %v1219
    %1271 = vmatprep.subr.mxu0 %v1224
    %1272 = vmatpush1.msra.mxu0 %v1223
    %1273 = vmatprep.subr.mxu0 %v1228
    %1274 = vmatpush1.msra.mxu0 %v1227
    %1275 = vmatprep.subr.mxu0 %v1232
    %1276 = vmatpush1.msra.mxu0 %v1231
    %1277 = vmatprep.subr.mxu0 %v1236
    %1278 = vmatpush1.msra.mxu0 %v1235
    %1279 = vmatprep.subr.mxu0 %v1240
    %1280 = vmatpush1.msra.mxu0 %v1239
    %1281 = vmatprep.subr.mxu0 %v1244
    %1282 = vmatpush1.msra.mxu0 %v1243
    %1283 = vmatprep.subr.mxu0 %v1248
    %1284 = vmatpush1.msra.mxu0 %v1247
    %1285 = vmatprep.subr.mxu0 %v1252
    %1286 = vmatpush1.msra.mxu0 %v1251
    %1287 = vmatprep.subr.mxu0 0.0
    %1288 = vmatpush1.msra.mxu0 0.0
    %1289 = vmatprep.subr.mxu0 0.0
    %1290 = vmatpush1.msra.mxu0 0.0
    %1291 = vmatprep.subr.mxu0 0.0
    %1292 = vmatpush1.msra.mxu0 0.0
    %1293 = vmatprep.subr.mxu0 0.0
    %1294 = vmatpush1.msra.mxu0 0.0
    %1295 = vmatprep.subr.mxu0 0.0
    %1296 = vmatpush1.msra.mxu0 0.0
    %1297 = vmatprep.subr.mxu0 0.0
    %1298 = vmatpush1.msra.mxu0 0.0
    %1299 = vmatprep.subr.mxu0 0.0
    %1300 = vmatpush1.msra.mxu0 0.0
    %1301 = vmatprep.subr.mxu0 0.0
    %1302 = vmatpush1.msra.mxu0 0.0
    %1303 = vmatprep.subr.mxu0 0.0
    %1304 = vmatpush1.msra.mxu0 0.0
    %1305 = vmatprep.subr.mxu0 0.0
    %1306 = vmatpush1.msra.mxu0 0.0
    %1307 = vmatprep.subr.mxu0 0.0
    %1308 = vmatpush1.msra.mxu0 0.0
    %1309 = vmatprep.subr.mxu0 0.0
    %1310 = vmatpush1.msra.mxu0 0.0
    %1311 = vmatprep.subr.mxu0 0.0
    %1312 = vmatpush1.msra.mxu0 0.0
    %1313 = vmatprep.subr.mxu0 0.0
    %1314 = vmatpush1.msra.mxu0 0.0
    %1315 = vmatprep.subr.mxu0 0.0
    %1316 = vmatpush1.msra.mxu0 0.0
    %1317 = vmatprep.subr.mxu0 0.0
    %1318 = vmatpush1.msra.mxu0 0.0
    %1319 = vmatprep.mubr.f32.mxu0 0.0
    %1320 = vmatmul.mubr.f32.gmra.mrb[0].mxu0 %v40
    %v1321 = vpop.f32.mrb[0].mxu0
    %v1322 = vadd.f32 0.0, %v1321
    %v1323 = vpop.f32.mrb[0].mxu0
    %v1324 = vadd.f32 0.0, %v1323
    %1325 = vdwg.mxu0
    %1326 = vmatprep.subr.mxu0 %v1194
    %1327 = vmatpush1.msra.mxu0 %v1193
    %1328 = vmatprep.subr.mxu0 %v1198
    %1329 = vmatpush1.msra.mxu0 %v1197
    %1330 = vmatprep.subr.mxu0 %v1202
    %1331 = vmatpush1.msra.mxu0 %v1201
    %1332 = vmatprep.subr.mxu0 %v1206
    %1333 = vmatpush1.msra.mxu0 %v1205
    %1334 = vmatprep.subr.mxu0 %v1210
    %1335 = vmatpush1.msra.mxu0 %v1209
    %1336 = vmatprep.subr.mxu0 %v1214
    %1337 = vmatpush1.msra.mxu0 %v1213
    %1338 = vmatprep.subr.mxu0 %v1218
    %1339 = vmatpush1.msra.mxu0 %v1217
    %1340 = vmatprep.subr.mxu0 %v1222
    %1341 = vmatpush1.msra.mxu0 %v1221
    %1342 = vmatprep.subr.mxu0 %v1226
    %1343 = vmatpush1.msra.mxu0 %v1225
    %1344 = vmatprep.subr.mxu0 %v1230
    %1345 = vmatpush1.msra.mxu0 %v1229
    %1346 = vmatprep.subr.mxu0 %v1234
    %1347 = vmatpush1.msra.mxu0 %v1233
    %1348 = vmatprep.subr.mxu0 %v1238
    %1349 = vmatpush1.msra.mxu0 %v1237
    %1350 = vmatprep.subr.mxu0 %v1242
    %1351 = vmatpush1.msra.mxu0 %v1241
    %1352 = vmatprep.subr.mxu0 %v1246
    %1353 = vmatpush1.msra.mxu0 %v1245
    %1354 = vmatprep.subr.mxu0 %v1250
    %1355 = vmatpush1.msra.mxu0 %v1249
    %1356 = vmatprep.subr.mxu0 %v1254
    %1357 = vmatpush1.msra.mxu0 %v1253
    %1358 = vmatprep.subr.mxu0 0.0
    %1359 = vmatpush1.msra.mxu0 0.0
    %1360 = vmatprep.subr.mxu0 0.0
    %1361 = vmatpush1.msra.mxu0 0.0
    %1362 = vmatprep.subr.mxu0 0.0
    %1363 = vmatpush1.msra.mxu0 0.0
    %1364 = vmatprep.subr.mxu0 0.0
    %1365 = vmatpush1.msra.mxu0 0.0
    %1366 = vmatprep.subr.mxu0 0.0
    %1367 = vmatpush1.msra.mxu0 0.0
    %1368 = vmatprep.subr.mxu0 0.0
    %1369 = vmatpush1.msra.mxu0 0.0
    %1370 = vmatprep.subr.mxu0 0.0
    %1371 = vmatpush1.msra.mxu0 0.0
    %1372 = vmatprep.subr.mxu0 0.0
    %1373 = vmatpush1.msra.mxu0 0.0
    %1374 = vmatprep.subr.mxu0 0.0
    %1375 = vmatpush1.msra.mxu0 0.0
    %1376 = vmatprep.subr.mxu0 0.0
    %1377 = vmatpush1.msra.mxu0 0.0
    %1378 = vmatprep.subr.mxu0 0.0
    %1379 = vmatpush1.msra.mxu0 0.0
    %1380 = vmatprep.subr.mxu0 0.0
    %1381 = vmatpush1.msra.mxu0 0.0
    %1382 = vmatprep.subr.mxu0 0.0
    %1383 = vmatpush1.msra.mxu0 0.0
    %1384 = vmatprep.subr.mxu0 0.0
    %1385 = vmatpush1.msra.mxu0 0.0
    %1386 = vmatprep.subr.mxu0 0.0
    %1387 = vmatpush1.msra.mxu0 0.0
    %1388 = vmatprep.subr.mxu0 0.0
    %1389 = vmatpush1.msra.mxu0 0.0
    %1390 = vmatprep.mubr.f32.mxu0 0.0
    %1391 = vmatmul.mubr.f32.gmra.mrb[0].mxu0 %v40
    %v1392 = vpop.f32.mrb[0].mxu0
    %v1393 = vadd.f32 0.0, %v1392
    %v1394 = vpop.f32.mrb[0].mxu0
    %v1395 = vadd.f32 0.0, %v1394
    %1396 = vdwg.mxu0
    %v1401 = vcombine.low %v1322, %v1324
    %v1402 = vcombine.low %v1393, %v1395
    %1405 = vst [vmem:[#allocation2] sm:$0xff] %v1401
    %1406 = vst [vmem:[#allocation2 + $0x8] sm:$0xff] %v1402
    %v1409 = vsub.f32 %v1322, %v22
    %v1410 = vsub.f32 %v1324, %v59
    %v1411 = vsub.f32 %v1393, %v23
    %v1412 = vsub.f32 %v1395, %v60
    %v1413 = vmul.f32 %v1409, %v1409
    %v1414 = vmul.f32 %v1410, %v1410
    %v1415 = vmul.f32 %v1411, %v1411
    %v1416 = vmul.f32 %v1412, %v1412
    %v1417 = vsel %vm110, %v1413, 0.0
    %v1418 = vsel %vm110, %v1414, 0.0
    %v1419 = vadd.f32 %v1417, %v1418
    %v1420 = vsel %vm110, %v1415, 0.0
    %v1421 = vadd.f32 %v1419, %v1420
    %v1422 = vsel %vm110, %v1416, 0.0
    %v1423 = vadd.f32 %v1421, %v1422
    %1424 = vadd.xlane.f32.xlu0 %v1423
    %v1425 = vpop.xlane.xlu0 %1424
    %v1426 = vrot.slane %v1425, 4
    %v1427 = vadd.f32 %v1425, %v1426
    %v1428 = vrot.slane %v1427, 2
    %v1429 = vadd.f32 %v1427, %v1428
    %v1430 = vrot.slane %v1429, 1
    %v1431 = vadd.f32 %v1429, %v1430
    %s1432 = vtos %v1431
    %v1433 = vstv %s1432
    %vm1434 = vcmask 0
    %1435 = vst.msk [vmem:[#allocation6] sm:$0x1] %vm1434, %v1433
    // Predicated region
    $region18: #{tpu_custom_call.1} parent=1 // pred_check
      _
    $region19: #{tpu_custom_call.1} parent=1 // pred_check_branch
      %1437 = sbr.rel (0) target = $region21
    $region20: #{tpu_custom_call.1} parent=1 // pred_region
      %s1439 = ssub.s32 256, 256
      %1440 = vsyncadd [#allocation3], %s1439
      %s1442 = sshll.u32 [#allocation2], 4
      %s1443 = int_to_ptr.vmem [resolvable:$true] %s1442
      %1445 = dma.vmem_to_hbm [thread:$0]  %s1443, 256, %s4, [#allocation3]
    $region21: #{tpu_custom_call.1} parent=1 // pred_fallthru
      _
    // Predicated region
    $region22: #{tpu_custom_call.1} parent=1 // pred_check
      _
    $region23: #{tpu_custom_call.1} parent=1 // pred_check_branch
      %1447 = sbr.rel (0) target = $region25
    $region24: #{tpu_custom_call.1} parent=1 // pred_region
      %s1449 = ssub.s32 64, 64
      %1450 = vsyncadd [#allocation5], %s1449
      %s1452 = sshll.u32 [#allocation4], 4
      %s1453 = int_to_ptr.vmem [resolvable:$true] %s1452
      %1455 = dma.vmem_to_hbm [thread:$0]  %s1453, 64, %s5, [#allocation5]
    $region25: #{tpu_custom_call.1} parent=1 // pred_fallthru
      _
    // Predicated region
    $region26: #{tpu_custom_call.1} parent=1 // pred_check
      _
    $region27: #{tpu_custom_call.1} parent=1 // pred_check_branch
      %1457 = sbr.rel (0) target = $region29
    $region28: #{tpu_custom_call.1} parent=1 // pred_region
      %s1459 = ssub.s32 16, 16
      %1460 = vsyncadd [#allocation5], %s1459
      %s1462 = sshll.u32 [#allocation6], 4
      %s1463 = int_to_ptr.vmem [resolvable:$true] %s1462
      %1465 = dma.vmem_to_hbm [thread:$0]  %s1463, 16, %s6, [#allocation5]
    $region29: #{tpu_custom_call.1} parent=1 // pred_fallthru
      _
    // Predicated region
    $region30: #{tpu_custom_call.1} parent=1 // pred_check
      _
    $region31: #{tpu_custom_call.1} parent=1 // pred_check_branch
      %1467 = sbr.rel (0) target = $region33
    $region32: #{tpu_custom_call.1} parent=1 // pred_region
      %1468 = dma.done [#allocation3], 256
    $region33: #{tpu_custom_call.1} parent=1 // pred_fallthru
      _
    // Predicated region
    $region34: #{tpu_custom_call.1} parent=1 // pred_check
      _
    $region35: #{tpu_custom_call.1} parent=1 // pred_check_branch
      %1470 = sbr.rel (0) target = $region37
    $region36: #{tpu_custom_call.1} parent=1 // pred_region
      %1471 = dma.done [#allocation5], 64
    $region37: #{tpu_custom_call.1} parent=1 // pred_fallthru
      _
    // Predicated region
    $region38: #{tpu_custom_call.1} parent=1 // pred_check
      _
    $region39: #{tpu_custom_call.1} parent=1 // pred_check_branch
      %1473 = sbr.rel (0) target = $region41
    $region40: #{tpu_custom_call.1} parent=1 // pred_region
      %1474 = dma.done [#allocation5], 16
    $region41: #{tpu_custom_call.1} parent=1 // pred_fallthru
      _
    %1475 = vsyncpa [#allocation3], 1
    %1476 = vsyncpa [#allocation5], 1

</llo_original>
